<compile_context>
chip_gen: v6e
topology: v6e:2x2x1
jax: 0.10.0
libtpu: 0.0.40
codegen_flags: <defaults>
</compile_context>

<pallas_src>
import math

import jax
import jax.numpy as jnp
from jax.experimental import pallas as pl
from jax.experimental.pallas import tpu as pltpu


# ----------------------------------------------------------------------------
# in-kernel helpers
# ----------------------------------------------------------------------------
def _softmax_last(s):
    # f32 softmax over the last axis; the divide goes to the EUP.
    s = s - jnp.max(s, axis=-1, keepdims=True)
    e = jnp.exp(s)
    return e * pl.reciprocal(jnp.sum(e, axis=-1, keepdims=True), approx=True)


def _dot2(a, b):
    return jnp.dot(a, b, preferred_element_type=jnp.float32)


def _dot2_t(a, b):
    # a @ b.T without materializing a transpose (contract last dim of both).
    return jax.lax.dot_general(
        a, b, (((1,), (1,)), ((), ())), preferred_element_type=jnp.float32)


# ----------------------------------------------------------------------------
# Fused kernel: (patch-embed folded into) cross-attn -> causal self-attn
#               -> lm_head + causal-LM cross-entropy.
# One grid step == one block of BB batch elements.
# ----------------------------------------------------------------------------
def _fused_caption_kernel(
    patches_ref, q_emb_ref, cap_emb_ref, mask_ref, labels_ref,
    w_pkv_ref, b_pkv_ref, ca_wq_ref, ca_wo_ref,
    sa_wqkv_ref, sa_wo_ref, w_lm_ref, b_lm_ref,
    logits_ref, nll_ref,
    x_ref, ctx_ref,
):
    D = ca_wq_ref.shape[0]
    BB = patches_ref.shape[0]
    Sq = q_emb_ref.shape[0] // BB
    T = x_ref.shape[0] // BB
    Tc = T - Sq

    # ---- cross-attn Q projection over the whole (BB*Sq, D) slab ------------
    # 1/sqrt(D) is pre-folded into ca_wq.
    q_all = _dot2(q_emb_ref[...], ca_wq_ref[...])                     # (BB*Sq, D) f32

    for b in range(BB):  # static unroll (BB is 1 or 2)
        # ---- vision patch-embed folded into the K/V projection -------------
        kv = _dot2(patches_ref[b], w_pkv_ref[...]) + b_pkv_ref[...]   # (Np, 2D) f32
        k = kv[:, :D].astype(jnp.bfloat16)
        v = kv[:, D:].astype(jnp.bfloat16)
        q_b = q_all[b * Sq:(b + 1) * Sq, :].astype(jnp.bfloat16)      # (Sq, D)
        s = _dot2_t(q_b, k)                                           # (Sq, Np) f32
        p = _softmax_last(s).astype(jnp.bfloat16)
        ctx = _dot2(p, v).astype(jnp.bfloat16)                        # (Sq, D)
        fused = _dot2(ctx, ca_wo_ref[...])                            # (Sq, D) f32

        # ---- decoder input [fused ; caption embeds] written in place -------
        x_ref[b * T:b * T + Sq, :] = fused
        x_ref[b * T + Sq:(b + 1) * T, :] = (
            cap_emb_ref[b * Tc:(b + 1) * Tc, :].astype(jnp.float32))

    # ---- decoder QKV projection as ONE matmul over BB*T rows ---------------
    x_b16 = x_ref[...].astype(jnp.bfloat16)
    qkv = _dot2(x_b16, sa_wqkv_ref[...])                              # (BB*T, 3D) f32

    row = jax.lax.broadcasted_iota(jnp.int32, (T, T), 0)
    col = jax.lax.broadcasted_iota(jnp.int32, (T, T), 1)
    causal = row >= col                                               # hoisted out of the loop

    for b in range(BB):  # per-batch scores (must not mix batch elements)
        sl = slice(b * T, (b + 1) * T)
        qs = qkv[sl, :D].astype(jnp.bfloat16)                         # 1/sqrt(D) pre-folded
        ks = qkv[sl, D:2 * D].astype(jnp.bfloat16)
        vs = qkv[sl, 2 * D:].astype(jnp.bfloat16)
        s2 = _dot2_t(qs, ks)                                          # (T, T) f32
        key_ok = mask_ref[b] > 0                                      # (1, T)
        # -1e30 is safe: the fused prefix keys are always valid, so no row can
        # ever be fully masked.
        s2 = jnp.where(causal & key_ok, s2, jnp.float32(-1e30))
        p2 = _softmax_last(s2).astype(jnp.bfloat16)
        ctx_ref[sl, :] = _dot2(p2, vs).astype(jnp.bfloat16)

    # ---- output projection + residual as ONE matmul over BB*T rows ---------
    hidden = x_ref[...] + _dot2(ctx_ref[...], sa_wo_ref[...])         # (BB*T, D) f32

    # ---- lm_head + (pre-shifted) causal-LM cross-entropy -------------------
    # NOTE(v7x scaling): with a realistic vocab this becomes a vocab-tiled grid
    # axis with an online logsumexp + Buffered(1) weight specs (64 MiB VMEM).
    logits = _dot2(hidden.astype(jnp.bfloat16), w_lm_ref[...]) + b_lm_ref[...]
    logits_ref[...] = logits                                          # lane-dense (BB*T, V)

    labels = labels_ref[...]                                          # (BB*T, 1), pre-shifted
    valid = labels != -100
    safe = jnp.where(valid, labels, 0)
    lane = jax.lax.broadcasted_iota(jnp.int32, logits.shape, 1)
    onehot = (lane == safe).astype(jnp.float32)
    mx = jnp.max(logits, axis=-1, keepdims=True)
    lse = mx + jnp.log(jnp.sum(jnp.exp(logits - mx), axis=-1, keepdims=True))
    tgt = jnp.sum(logits * onehot, axis=-1, keepdims=True)
    nll = (lse - tgt) * valid.astype(jnp.float32)                     # (BB*T, 1)

    # Partial NLL sum for this block (single supported sublane reduction).
    nll_ref[0] = jnp.sum(nll, axis=0, keepdims=True)                  # (1, 1)


def _fused_forward(patches, q_emb_flat, cap_emb_flat, attn_mask, labels_flat,
                   params, nb):
    B, Np, patch_dim = patches.shape
    D = q_emb_flat.shape[1]
    Sq = q_emb_flat.shape[0] // B
    Tc = cap_emb_flat.shape[0] // B
    T = Sq + Tc
    V = params["w_lm"].shape[1]
    if nb < 1 or B % nb != 0:
        nb = 1
    BB = B // nb

    def wspec(shape):
        zeros = (0,) * len(shape)
        return pl.BlockSpec(shape, lambda b: zeros)

    def bspec(shape):
        tail = (0,) * (len(shape) - 1)
        return pl.BlockSpec(shape, lambda b: (b,) + tail)

    flops = 2 * B * (
        Np * patch_dim * (2 * D)      # patches -> K,V (patch embed folded)
        + Sq * D * D                  # Wq
        + 2 * Sq * Np * D             # cross-attn scores + context
        + Sq * D * D                  # cross-attn Wo
        + T * D * (3 * D)             # decoder QKV
        + 2 * T * T * D               # decoder scores + context
        + T * D * D                   # decoder Wo
        + T * D * V)                  # lm head
    transcendentals = B * (Sq * Np + T * T + 2 * T * V)
    bytes_accessed = int(
        patches.size * 2 + q_emb_flat.size * 2 + cap_emb_flat.size * 2
        + attn_mask.size * 4 + labels_flat.size * 4
        + 2 * (params["w_pkv"].size + params["ca_wq"].size
               + params["ca_wo"].size + params["sa_wqkv"].size
               + params["sa_wo"].size + params["w_lm"].size)
        + 4 * (params["b_pkv"].size + params["b_lm"].size)
        + B * T * V * 4 + nb * 4)

    logits_flat, nll_sums = pl.pallas_call(
        _fused_caption_kernel,
        out_shape=(
            jax.ShapeDtypeStruct((B * T, V), jnp.float32),
            jax.ShapeDtypeStruct((nb, 1, 1), jnp.float32),
        ),
        grid=(nb,),
        in_specs=[
            bspec((BB, Np, patch_dim)),       # patches
            bspec((BB * Sq, D)),              # question embeddings (flat)
            bspec((BB * Tc, D)),              # caption input embeddings (flat)
            bspec((BB, 1, T)),                # key-padding mask
            bspec((BB * T, 1)),               # pre-shifted labels (flat)
            wspec((patch_dim, 2 * D)),        # w_pkv (patch-embed folded into KV)
            wspec((1, 2 * D)),                # b_pkv
            wspec((D, D)),                    # ca_wq  (1/sqrt(D) folded in)
            wspec((D, D)),                    # ca_wo
            wspec((D, 3 * D)),                # sa_wqkv (1/sqrt(D) folded into Q)
            wspec((D, D)),                    # sa_wo
            wspec((D, V)),                    # w_lm
            wspec((1, V)),                    # b_lm
        ],
        out_specs=(
            bspec((BB * T, V)),               # logits (lane-dense)
            bspec((1, 1, 1)),                 # per-block NLL partial sum
        ),
        scratch_shapes=[
            pltpu.VMEM((BB * T, D), jnp.float32),   # decoder input / residual
            pltpu.VMEM((BB * T, D), jnp.bfloat16),  # attention context
        ],
        compiler_params=pltpu.CompilerParams(
            dimension_semantics=("parallel",)),
        cost_estimate=pl.CostEstimate(
            flops=int(flops),
            transcendentals=int(transcendentals),
            bytes_accessed=int(bytes_accessed)),
    )(
        patches, q_emb_flat, cap_emb_flat, attn_mask, labels_flat,
        params["w_pkv"], params["b_pkv"],
        params["ca_wq"], params["ca_wo"],
        params["sa_wqkv"], params["sa_wo"],
        params["w_lm"], params["b_lm"],
    )
    return logits_flat, nll_sums


# ----------------------------------------------------------------------------
# Parameter folding (done ONCE outside jit): patch-embed -> KV, 1/sqrt(D) -> Wq
# ----------------------------------------------------------------------------
def fold_params(raw):
    D = raw["ca_wq"].shape[0]
    inv = 1.0 / math.sqrt(D)
    w_patch = raw["w_patch"].astype(jnp.float32)
    ca_wkv = raw["ca_wkv"].astype(jnp.float32)
    w_pkv = (w_patch @ ca_wkv).astype(jnp.bfloat16)                    # (pd, 2D)
    b_pkv = raw["b_patch"].astype(jnp.float32) @ ca_wkv                # (1, 2D) f32
    ca_wq = (raw["ca_wq"].astype(jnp.float32) * inv).astype(jnp.bfloat16)
    sa = raw["sa_wqkv"].astype(jnp.float32)
    sa = sa.at[:, :D].multiply(inv)                                    # scale Q-third only
    return {
        "patch": raw["patch"],
        "embed": raw["embed"],
        "w_pkv": w_pkv, "b_pkv": b_pkv,
        "ca_wq": ca_wq, "ca_wo": raw["ca_wo"],
        "sa_wqkv": sa.astype(jnp.bfloat16), "sa_wo": raw["sa_wo"],
        "w_lm": raw["w_lm"], "b_lm": raw["b_lm"],
    }


def _num_batch_blocks(batch):
    # 2 grid steps ("parallel" -> one per TensorCore) only on two-core chips
    # (v7x / megacore v4 / v5p); single fused step on single-core v5e / v6e.
    try:
        kind = jax.devices()[0].device_kind.lower()
    except Exception:
        kind = ""
    two_core = any(t in kind for t in ("v7", "v4", "v5p"))
    if two_core and batch >= 2 and batch % 2 == 0:
        return 2
    return 1


# ----------------------------------------------------------------------------
# Forward glue (mirrors CaptionGenerating.forward dataflow) — fully jit-able.
# ----------------------------------------------------------------------------
def caption_generating_forward(image, question_ids, caption_ids, caption_mask,
                               params, pad_token_id, num_batch_blocks=1):
    B, C, H, W = image.shape
    P = params["patch"]
    Hp, Wp = H // P, W // P
    Np = Hp * Wp
    patch_dim = C * P * P
    D = params["ca_wq"].shape[0]

    # vision_encoder: patchify (layout only) — the projection is fused into
    # the kernel's KV matmul.
    patches = image.reshape(B, C, Hp, P, Wp, P).transpose(0, 2, 4, 1, 3, 5)
    patches = patches.reshape(B, Np, patch_dim).astype(jnp.bfloat16)

    # TODO(synk): llm.tokenize / tokenizer have no Pallas equivalent — token
    # ids + padding mask are supplied directly; embedding gathers go to XLA.
    q_embeds = jnp.take(params["embed"], question_ids, axis=0)         # (B, Sq, D) bf16

    caption_input_ids = caption_ids[:, :-1]
    caption_target_ids = caption_ids[:, 1:].astype(jnp.int32)
    cap_embeds = jnp.take(params["embed"], caption_input_ids, axis=0)  # (B, Tc, D) bf16

    Sq = q_embeds.shape[1]
    Tc = cap_embeds.shape[1]
    T = Sq + Tc

    # labels = [-100 over fused prefix ; caption target ids]  (pad targets are
    # intentionally NOT masked to -100 — mirrors the PyTorch module exactly).
    labels = jnp.concatenate(
        [jnp.full((B, Sq), -100, jnp.int32), caption_target_ids], axis=1)
    # HF-style shift precomputed so the kernel's CE runs on full tile-aligned T.
    shifted_labels = jnp.concatenate(
        [labels[:, 1:], jnp.full((B, 1), -100, jnp.int32)], axis=1)     # (B, T)
    labels_flat = shifted_labels.reshape(B * T, 1)

    # NOTE: mirrors the reference exactly — it concatenates attention_mask[:, 1:]
    # (target-side mask) after the always-valid fused prefix.
    attn_mask = jnp.concatenate(
        [jnp.ones((B, Sq), jnp.int32), caption_mask[:, 1:].astype(jnp.int32)],
        axis=1).reshape(B, 1, T)

    q_emb_flat = q_embeds.reshape(B * Sq, D)
    cap_emb_flat = cap_embeds.reshape(B * Tc, D)

    logits_flat, nll_sums = _fused_forward(
        patches, q_emb_flat, cap_emb_flat, attn_mask, labels_flat, params,
        num_batch_blocks)

    V = logits_flat.shape[-1]
    logits = logits_flat.reshape(B, T, V)

    nll_total = jnp.sum(nll_sums)
    # Valid-token count depends only on the labels -> no kernel output needed.
    valid_total = jnp.sum((shifted_labels != -100).astype(jnp.float32))
    loss = nll_total / jnp.maximum(valid_total, jnp.float32(1.0))

    # Device-side, jit-safe analogues of the module's early-return-0.0 paths:
    # all-padding batch and non-finite loss both yield 0.0.
    any_caption_tok = jnp.sum((caption_ids != pad_token_id).astype(jnp.int32)) > 0
    loss = jnp.where(any_caption_tok, loss, jnp.float32(0.0))
    loss = jnp.where(jnp.isfinite(loss), loss, jnp.float32(0.0))
    return loss, logits


# ----------------------------------------------------------------------------
if __name__ == "__main__":
    key = jax.random.PRNGKey(0)
    B, C, H, W = 2, 4, 16, 16        # image batch, NCHW
    P = 8                             # patch size -> Np = 4 patches
    D = 128                           # hidden dim (lane-dense)
    VOCAB = 128
    SQ = 8                            # question token length
    LC = 9                            # caption token length (before shift)
    PAD_ID = 0

    ks = jax.random.split(key, 12)
    image = jax.random.normal(ks[0], (B, C, H, W), jnp.float32)
    question_ids = jax.random.randint(ks[1], (B, SQ), 0, VOCAB)
    caption_ids = jax.random.randint(ks[2], (B, LC), 1, VOCAB)
    caption_ids = caption_ids.at[1, -2:].set(PAD_ID)         # emulate padding
    caption_mask = (caption_ids != PAD_ID).astype(jnp.int32)

    patch_dim = C * P * P

    def mk_w(k, shape, scale):
        return (jax.random.normal(k, shape, jnp.float32) * scale).astype(jnp.bfloat16)

    raw_params = {
        "patch": P,
        "w_patch": mk_w(ks[3], (patch_dim, D), 1.0 / math.sqrt(patch_dim)),
        "b_patch": jnp.zeros((1, D), jnp.float32),
        "embed": mk_w(ks[4], (VOCAB, D), 0.02),
        "ca_wq": mk_w(ks[5], (D, D), 1.0 / math.sqrt(D)),
        "ca_wkv": mk_w(ks[6], (D, 2 * D), 1.0 / math.sqrt(D)),
        "ca_wo": mk_w(ks[7], (D, D), 1.0 / math.sqrt(D)),
        "sa_wqkv": mk_w(ks[8], (D, 3 * D), 1.0 / math.sqrt(D)),
        "sa_wo": mk_w(ks[9], (D, D), 1.0 / math.sqrt(D)),
        "w_lm": mk_w(ks[10], (D, VOCAB), 1.0 / math.sqrt(D)),
        "b_lm": jnp.zeros((1, VOCAB), jnp.float32),
    }
    params = fold_params(raw_params)          # algebraic weight folds, done once
    NB = _num_batch_blocks(B)

    fwd = jax.jit(
        lambda img, qid, cid, cm: caption_generating_forward(
            img, qid, cid, cm, params, PAD_ID, NB))
    loss, logits = fwd(image, question_ids, caption_ids, caption_mask)
    jax.block_until_ready((loss, logits))
    assert bool(jnp.isfinite(loss)), "loss is not finite"
    assert logits.shape == (B, SQ + LC - 1, VOCAB)
    print("KERNEL_OK")
</pallas_src>

<mosaic_0001>
module attributes {stable_mosaic.version = 11 : i64} {
  func.func @_fused_caption_kernel(%arg0: i32, %arg1: memref<2x4x256xbf16, #tpu.memory_space<vmem>>, %arg2: memref<16x128xbf16, #tpu.memory_space<vmem>>, %arg3: memref<16x128xbf16, #tpu.memory_space<vmem>>, %arg4: memref<2x1x16xi32, #tpu.memory_space<vmem>>, %arg5: memref<32x1xi32, #tpu.memory_space<vmem>>, %arg6: memref<256x256xbf16, #tpu.memory_space<vmem>>, %arg7: memref<1x256xf32, #tpu.memory_space<vmem>>, %arg8: memref<128x128xbf16, #tpu.memory_space<vmem>>, %arg9: memref<128x128xbf16, #tpu.memory_space<vmem>>, %arg10: memref<128x384xbf16, #tpu.memory_space<vmem>>, %arg11: memref<128x128xbf16, #tpu.memory_space<vmem>>, %arg12: memref<128x128xbf16, #tpu.memory_space<vmem>>, %arg13: memref<1x128xf32, #tpu.memory_space<vmem>>, %arg14: memref<32x128xf32, #tpu.memory_space<vmem>>, %arg15: memref<1x1x1xf32, #tpu.memory_space<vmem>>, %arg16: memref<32x128xf32, #tpu.memory_space<vmem>>, %arg17: memref<32x128xbf16, #tpu.memory_space<vmem>>) attributes {dimension_semantics = [#tpu.dimension_semantics<parallel>], iteration_bounds = array<i64: 1>, scalar_prefetch = 0 : i64, scratch_operands = 2 : i64, tpu.core_type = #tpu.core_type<tc>, window_params = [{transform_indices = @transform_0, window_bounds = array<i64: 2, 4, 256>}, {transform_indices = @transform_1, window_bounds = array<i64: 16, 128>}, {transform_indices = @transform_2, window_bounds = array<i64: 16, 128>}, {transform_indices = @transform_3, window_bounds = array<i64: 2, 1, 16>}, {transform_indices = @transform_4, window_bounds = array<i64: 32, 1>}, {pipeline_mode = #tpu.pipeline_mode<synchronous>, transform_indices = @transform_5, window_bounds = array<i64: 256, 256>}, {pipeline_mode = #tpu.pipeline_mode<synchronous>, transform_indices = @transform_6, window_bounds = array<i64: 1, 256>}, {pipeline_mode = #tpu.pipeline_mode<synchronous>, transform_indices = @transform_7, window_bounds = array<i64: 128, 128>}, {pipeline_mode = #tpu.pipeline_mode<synchronous>, transform_indices = @transform_8, window_bounds = array<i64: 128, 128>}, {pipeline_mode = #tpu.pipeline_mode<synchronous>, transform_indices = @transform_9, window_bounds = array<i64: 128, 384>}, {pipeline_mode = #tpu.pipeline_mode<synchronous>, transform_indices = @transform_10, window_bounds = array<i64: 128, 128>}, {pipeline_mode = #tpu.pipeline_mode<synchronous>, transform_indices = @transform_11, window_bounds = array<i64: 128, 128>}, {pipeline_mode = #tpu.pipeline_mode<synchronous>, transform_indices = @transform_12, window_bounds = array<i64: 1, 128>}, {transform_indices = @transform_13, window_bounds = array<i64: 32, 128>}, {transform_indices = @transform_14, window_bounds = array<i64: 1, 1, 1>}]} {
    %c0 = arith.constant 0 : index
    %c0_0 = arith.constant 0 : index
    %0 = vector.load %arg2[%c0, %c0_0] : memref<16x128xbf16, #tpu.memory_space<vmem>>, vector<16x128xbf16>
    %c0_1 = arith.constant 0 : index
    %c0_2 = arith.constant 0 : index
    %1 = vector.load %arg8[%c0_1, %c0_2] : memref<128x128xbf16, #tpu.memory_space<vmem>>, vector<128x128xbf16>
    %cst = arith.constant dense<0.000000e+00> : vector<16x128xf32>
    %2 = tpu.matmul %0, %1, %cst {dimension_numbers = #tpu.dot_dimension_numbers<[1], [0], [0], [1], [0, 0, 1, 1], [], []>} : vector<16x128xbf16>, vector<128x128xbf16>, vector<16x128xf32> -> vector<16x128xf32>
    %c0_3 = arith.constant 0 : index
    %c0_4 = arith.constant 0 : index
    %c0_5 = arith.constant 0 : index
    %3 = vector.load %arg1[%c0_3, %c0_4, %c0_5] : memref<2x4x256xbf16, #tpu.memory_space<vmem>>, vector<1x4x256xbf16>
    %4 = vector.shape_cast %3 : vector<1x4x256xbf16> to vector<4x256xbf16>
    %c0_6 = arith.constant 0 : index
    %c0_7 = arith.constant 0 : index
    %5 = vector.load %arg6[%c0_6, %c0_7] : memref<256x256xbf16, #tpu.memory_space<vmem>>, vector<256x256xbf16>
    %cst_8 = arith.constant dense<0.000000e+00> : vector<4x256xf32>
    %6 = tpu.matmul %4, %5, %cst_8 {dimension_numbers = #tpu.dot_dimension_numbers<[1], [0], [0], [1], [0, 0, 1, 1], [], []>} : vector<4x256xbf16>, vector<256x256xbf16>, vector<4x256xf32> -> vector<4x256xf32>
    %c0_9 = arith.constant 0 : index
    %c0_10 = arith.constant 0 : index
    %7 = vector.load %arg7[%c0_9, %c0_10] : memref<1x256xf32, #tpu.memory_space<vmem>>, vector<1x256xf32>
    %8 = vector.broadcast %7 : vector<1x256xf32> to vector<4x256xf32>
    %9 = arith.addf %6, %8 : vector<4x256xf32>
    %10 = vector.extract_strided_slice %9 {offsets = [0, 0], sizes = [4, 128], strides = [1, 1]} : vector<4x256xf32> to vector<4x128xf32>
    %11 = arith.truncf %10 : vector<4x128xf32> to vector<4x128xbf16>
    %12 = vector.extract_strided_slice %9 {offsets = [0, 128], sizes = [4, 128], strides = [1, 1]} : vector<4x256xf32> to vector<4x128xf32>
    %13 = arith.truncf %12 : vector<4x128xf32> to vector<4x128xbf16>
    %14 = vector.extract_strided_slice %2 {offsets = [0, 0], sizes = [8, 128], strides = [1, 1]} : vector<16x128xf32> to vector<8x128xf32>
    %15 = arith.truncf %14 : vector<8x128xf32> to vector<8x128xbf16>
    %cst_11 = arith.constant dense<0.000000e+00> : vector<8x4xf32>
    %16 = tpu.matmul %15, %11, %cst_11 {dimension_numbers = #tpu.dot_dimension_numbers<[1], [1], [0], [0], [0, 0, 1, 0], [], []>} : vector<8x128xbf16>, vector<4x128xbf16>, vector<8x4xf32> -> vector<8x4xf32>
    %cst_12 = arith.constant dense<0xFF800000> : vector<8xf32>
    %17 = vector.multi_reduction <maximumf>, %16, %cst_12 [1] : vector<8x4xf32> to vector<8xf32>
    %18 = vector.shape_cast %17 : vector<8xf32> to vector<8x1xf32>
    %19 = vector.broadcast %18 : vector<8x1xf32> to vector<8x4xf32>
    %20 = arith.subf %16, %19 : vector<8x4xf32>
    %21 = math.exp %20 : vector<8x4xf32>
    %cst_13 = arith.constant dense<0.000000e+00> : vector<8xf32>
    %22 = vector.multi_reduction <add>, %21, %cst_13 [1] : vector<8x4xf32> to vector<8xf32>
    %23 = vector.shape_cast %22 : vector<8xf32> to vector<8x1xf32>
    %24 = tpu.reciprocal %23 {approx = true} : vector<8x1xf32> -> vector<8x1xf32>
    %25 = vector.broadcast %24 : vector<8x1xf32> to vector<8x4xf32>
    %26 = arith.mulf %21, %25 : vector<8x4xf32>
    %27 = arith.truncf %26 : vector<8x4xf32> to vector<8x4xbf16>
    %cst_14 = arith.constant dense<0.000000e+00> : vector<8x128xf32>
    %28 = tpu.matmul %27, %13, %cst_14 {dimension_numbers = #tpu.dot_dimension_numbers<[1], [0], [0], [1], [0, 0, 1, 1], [], []>} : vector<8x4xbf16>, vector<4x128xbf16>, vector<8x128xf32> -> vector<8x128xf32>
    %29 = arith.truncf %28 : vector<8x128xf32> to vector<8x128xbf16>
    %c0_15 = arith.constant 0 : index
    %c0_16 = arith.constant 0 : index
    %30 = vector.load %arg9[%c0_15, %c0_16] : memref<128x128xbf16, #tpu.memory_space<vmem>>, vector<128x128xbf16>
    %cst_17 = arith.constant dense<0.000000e+00> : vector<8x128xf32>
    %31 = tpu.matmul %29, %30, %cst_17 {dimension_numbers = #tpu.dot_dimension_numbers<[1], [0], [0], [1], [0, 0, 1, 1], [], []>} : vector<8x128xbf16>, vector<128x128xbf16>, vector<8x128xf32> -> vector<8x128xf32>
    %c0_18 = arith.constant 0 : index
    %c0_19 = arith.constant 0 : index
    %32 = vector.load %arg16[%c0_18, %c0_19] : memref<32x128xf32, #tpu.memory_space<vmem>>, vector<8x128xf32>
    tpu.vector_store %arg16[%c0_18, %c0_19], %31 {strides = array<i32>} : memref<32x128xf32, #tpu.memory_space<vmem>>, vector<8x128xf32>,
    %c0_20 = arith.constant 0 : index
    %c0_21 = arith.constant 0 : index
    %33 = vector.load %arg3[%c0_20, %c0_21] : memref<16x128xbf16, #tpu.memory_space<vmem>>, vector<8x128xbf16>
    %34 = arith.extf %33 : vector<8x128xbf16> to vector<8x128xf32>
    %c8 = arith.constant 8 : index
    %c0_22 = arith.constant 0 : index
    %35 = vector.load %arg16[%c8, %c0_22] : memref<32x128xf32, #tpu.memory_space<vmem>>, vector<8x128xf32>
    tpu.vector_store %arg16[%c8, %c0_22], %34 {strides = array<i32>} : memref<32x128xf32, #tpu.memory_space<vmem>>, vector<8x128xf32>,
    %c1 = arith.constant 1 : index
    %c0_23 = arith.constant 0 : index
    %c0_24 = arith.constant 0 : index
    %36 = vector.load %arg1[%c1, %c0_23, %c0_24] : memref<2x4x256xbf16, #tpu.memory_space<vmem>>, vector<1x4x256xbf16>
    %37 = vector.shape_cast %36 : vector<1x4x256xbf16> to vector<4x256xbf16>
    %c0_25 = arith.constant 0 : index
    %c0_26 = arith.constant 0 : index
    %38 = vector.load %arg6[%c0_25, %c0_26] : memref<256x256xbf16, #tpu.memory_space<vmem>>, vector<256x256xbf16>
    %cst_27 = arith.constant dense<0.000000e+00> : vector<4x256xf32>
    %39 = tpu.matmul %37, %38, %cst_27 {dimension_numbers = #tpu.dot_dimension_numbers<[1], [0], [0], [1], [0, 0, 1, 1], [], []>} : vector<4x256xbf16>, vector<256x256xbf16>, vector<4x256xf32> -> vector<4x256xf32>
    %c0_28 = arith.constant 0 : index
    %c0_29 = arith.constant 0 : index
    %40 = vector.load %arg7[%c0_28, %c0_29] : memref<1x256xf32, #tpu.memory_space<vmem>>, vector<1x256xf32>
    %41 = vector.broadcast %40 : vector<1x256xf32> to vector<4x256xf32>
    %42 = arith.addf %39, %41 : vector<4x256xf32>
    %43 = vector.extract_strided_slice %42 {offsets = [0, 0], sizes = [4, 128], strides = [1, 1]} : vector<4x256xf32> to vector<4x128xf32>
    %44 = arith.truncf %43 : vector<4x128xf32> to vector<4x128xbf16>
    %45 = vector.extract_strided_slice %42 {offsets = [0, 128], sizes = [4, 128], strides = [1, 1]} : vector<4x256xf32> to vector<4x128xf32>
    %46 = arith.truncf %45 : vector<4x128xf32> to vector<4x128xbf16>
    %47 = vector.extract_strided_slice %2 {offsets = [8, 0], sizes = [8, 128], strides = [1, 1]} : vector<16x128xf32> to vector<8x128xf32>
    %48 = arith.truncf %47 : vector<8x128xf32> to vector<8x128xbf16>
    %cst_30 = arith.constant dense<0.000000e+00> : vector<8x4xf32>
    %49 = tpu.matmul %48, %44, %cst_30 {dimension_numbers = #tpu.dot_dimension_numbers<[1], [1], [0], [0], [0, 0, 1, 0], [], []>} : vector<8x128xbf16>, vector<4x128xbf16>, vector<8x4xf32> -> vector<8x4xf32>
    %cst_31 = arith.constant dense<0xFF800000> : vector<8xf32>
    %50 = vector.multi_reduction <maximumf>, %49, %cst_31 [1] : vector<8x4xf32> to vector<8xf32>
    %51 = vector.shape_cast %50 : vector<8xf32> to vector<8x1xf32>
    %52 = vector.broadcast %51 : vector<8x1xf32> to vector<8x4xf32>
    %53 = arith.subf %49, %52 : vector<8x4xf32>
    %54 = math.exp %53 : vector<8x4xf32>
    %cst_32 = arith.constant dense<0.000000e+00> : vector<8xf32>
    %55 = vector.multi_reduction <add>, %54, %cst_32 [1] : vector<8x4xf32> to vector<8xf32>
    %56 = vector.shape_cast %55 : vector<8xf32> to vector<8x1xf32>
    %57 = tpu.reciprocal %56 {approx = true} : vector<8x1xf32> -> vector<8x1xf32>
    %58 = vector.broadcast %57 : vector<8x1xf32> to vector<8x4xf32>
    %59 = arith.mulf %54, %58 : vector<8x4xf32>
    %60 = arith.truncf %59 : vector<8x4xf32> to vector<8x4xbf16>
    %cst_33 = arith.constant dense<0.000000e+00> : vector<8x128xf32>
    %61 = tpu.matmul %60, %46, %cst_33 {dimension_numbers = #tpu.dot_dimension_numbers<[1], [0], [0], [1], [0, 0, 1, 1], [], []>} : vector<8x4xbf16>, vector<4x128xbf16>, vector<8x128xf32> -> vector<8x128xf32>
    %62 = arith.truncf %61 : vector<8x128xf32> to vector<8x128xbf16>
    %c0_34 = arith.constant 0 : index
    %c0_35 = arith.constant 0 : index
    %63 = vector.load %arg9[%c0_34, %c0_35] : memref<128x128xbf16, #tpu.memory_space<vmem>>, vector<128x128xbf16>
    %cst_36 = arith.constant dense<0.000000e+00> : vector<8x128xf32>
    %64 = tpu.matmul %62, %63, %cst_36 {dimension_numbers = #tpu.dot_dimension_numbers<[1], [0], [0], [1], [0, 0, 1, 1], [], []>} : vector<8x128xbf16>, vector<128x128xbf16>, vector<8x128xf32> -> vector<8x128xf32>
    %c16 = arith.constant 16 : index
    %c0_37 = arith.constant 0 : index
    %65 = vector.load %arg16[%c16, %c0_37] : memref<32x128xf32, #tpu.memory_space<vmem>>, vector<8x128xf32>
    tpu.vector_store %arg16[%c16, %c0_37], %64 {strides = array<i32>} : memref<32x128xf32, #tpu.memory_space<vmem>>, vector<8x128xf32>,
    %c8_38 = arith.constant 8 : index
    %c0_39 = arith.constant 0 : index
    %66 = vector.load %arg3[%c8_38, %c0_39] : memref<16x128xbf16, #tpu.memory_space<vmem>>, vector<8x128xbf16>
    %67 = arith.extf %66 : vector<8x128xbf16> to vector<8x128xf32>
    %c24 = arith.constant 24 : index
    %c0_40 = arith.constant 0 : index
    %68 = vector.load %arg16[%c24, %c0_40] : memref<32x128xf32, #tpu.memory_space<vmem>>, vector<8x128xf32>
    tpu.vector_store %arg16[%c24, %c0_40], %67 {strides = array<i32>} : memref<32x128xf32, #tpu.memory_space<vmem>>, vector<8x128xf32>,
    %c0_41 = arith.constant 0 : index
    %c0_42 = arith.constant 0 : index
    %69 = vector.load %arg16[%c0_41, %c0_42] : memref<32x128xf32, #tpu.memory_space<vmem>>, vector<32x128xf32>
    %70 = arith.truncf %69 : vector<32x128xf32> to vector<32x128xbf16>
    %c0_43 = arith.constant 0 : index
    %c0_44 = arith.constant 0 : index
    %71 = vector.load %arg10[%c0_43, %c0_44] : memref<128x384xbf16, #tpu.memory_space<vmem>>, vector<128x384xbf16>
    %cst_45 = arith.constant dense<0.000000e+00> : vector<32x384xf32>
    %72 = tpu.matmul %70, %71, %cst_45 {dimension_numbers = #tpu.dot_dimension_numbers<[1], [0], [0], [1], [0, 0, 1, 1], [], []>} : vector<32x128xbf16>, vector<128x384xbf16>, vector<32x384xf32> -> vector<32x384xf32>
    %73 = tpu.iota {dimensions = array<i32: 0>} : vector<16x16xi32>
    %74 = tpu.iota {dimensions = array<i32: 1>} : vector<16x16xi32>
    %75 = arith.cmpi sge, %73, %74 : vector<16x16xi32>
    %76 = vector.extract_strided_slice %72 {offsets = [0, 0], sizes = [16, 128], strides = [1, 1]} : vector<32x384xf32> to vector<16x128xf32>
    %77 = arith.truncf %76 : vector<16x128xf32> to vector<16x128xbf16>
    %78 = vector.extract_strided_slice %72 {offsets = [0, 128], sizes = [16, 128], strides = [1, 1]} : vector<32x384xf32> to vector<16x128xf32>
    %79 = arith.truncf %78 : vector<16x128xf32> to vector<16x128xbf16>
    %80 = vector.extract_strided_slice %72 {offsets = [0, 256], sizes = [16, 128], strides = [1, 1]} : vector<32x384xf32> to vector<16x128xf32>
    %81 = arith.truncf %80 : vector<16x128xf32> to vector<16x128xbf16>
    %cst_46 = arith.constant dense<0.000000e+00> : vector<16x16xf32>
    %82 = tpu.matmul %77, %79, %cst_46 {dimension_numbers = #tpu.dot_dimension_numbers<[1], [1], [0], [0], [0, 0, 1, 0], [], []>} : vector<16x128xbf16>, vector<16x128xbf16>, vector<16x16xf32> -> vector<16x16xf32>
    %c0_47 = arith.constant 0 : index
    %c0_48 = arith.constant 0 : index
    %c0_49 = arith.constant 0 : index
    %83 = vector.load %arg4[%c0_47, %c0_48, %c0_49] : memref<2x1x16xi32, #tpu.memory_space<vmem>>, vector<1x1x16xi32>
    %84 = vector.shape_cast %83 : vector<1x1x16xi32> to vector<1x16xi32>
    %c0_i32 = arith.constant 0 : i32
    %85 = vector.broadcast %c0_i32 : i32 to vector<1x16xi32>
    %86 = arith.cmpi sgt, %84, %85 : vector<1x16xi32>
    %87 = vector.broadcast %86 : vector<1x16xi1> to vector<16x16xi1>
    %88 = arith.andi %75, %87 : vector<16x16xi1>
    %cst_50 = arith.constant -1.000000e+30 : f32
    %89 = vector.broadcast %cst_50 : f32 to vector<16x16xf32>
    %90 = arith.select %88, %82, %89 : vector<16x16xi1>, vector<16x16xf32>
    %cst_51 = arith.constant dense<0xFF800000> : vector<16xf32>
    %91 = vector.multi_reduction <maximumf>, %90, %cst_51 [1] : vector<16x16xf32> to vector<16xf32>
    %92 = vector.shape_cast %91 : vector<16xf32> to vector<16x1xf32>
    %93 = vector.broadcast %92 : vector<16x1xf32> to vector<16x16xf32>
    %94 = arith.subf %90, %93 : vector<16x16xf32>
    %95 = math.exp %94 : vector<16x16xf32>
    %cst_52 = arith.constant dense<0.000000e+00> : vector<16xf32>
    %96 = vector.multi_reduction <add>, %95, %cst_52 [1] : vector<16x16xf32> to vector<16xf32>
    %97 = vector.shape_cast %96 : vector<16xf32> to vector<16x1xf32>
    %98 = tpu.reciprocal %97 {approx = true} : vector<16x1xf32> -> vector<16x1xf32>
    %99 = vector.broadcast %98 : vector<16x1xf32> to vector<16x16xf32>
    %100 = arith.mulf %95, %99 : vector<16x16xf32>
    %101 = arith.truncf %100 : vector<16x16xf32> to vector<16x16xbf16>
    %cst_53 = arith.constant dense<0.000000e+00> : vector<16x128xf32>
    %102 = tpu.matmul %101, %81, %cst_53 {dimension_numbers = #tpu.dot_dimension_numbers<[1], [0], [0], [1], [0, 0, 1, 1], [], []>} : vector<16x16xbf16>, vector<16x128xbf16>, vector<16x128xf32> -> vector<16x128xf32>
    %103 = arith.truncf %102 : vector<16x128xf32> to vector<16x128xbf16>
    %c0_54 = arith.constant 0 : index
    %c0_55 = arith.constant 0 : index
    %104 = vector.load %arg17[%c0_54, %c0_55] : memref<32x128xbf16, #tpu.memory_space<vmem>>, vector<16x128xbf16>
    tpu.vector_store %arg17[%c0_54, %c0_55], %103 {strides = array<i32>} : memref<32x128xbf16, #tpu.memory_space<vmem>>, vector<16x128xbf16>,
    %105 = vector.extract_strided_slice %72 {offsets = [16, 0], sizes = [16, 128], strides = [1, 1]} : vector<32x384xf32> to vector<16x128xf32>
    %106 = arith.truncf %105 : vector<16x128xf32> to vector<16x128xbf16>
    %107 = vector.extract_strided_slice %72 {offsets = [16, 128], sizes = [16, 128], strides = [1, 1]} : vector<32x384xf32> to vector<16x128xf32>
    %108 = arith.truncf %107 : vector<16x128xf32> to vector<16x128xbf16>
    %109 = vector.extract_strided_slice %72 {offsets = [16, 256], sizes = [16, 128], strides = [1, 1]} : vector<32x384xf32> to vector<16x128xf32>
    %110 = arith.truncf %109 : vector<16x128xf32> to vector<16x128xbf16>
    %cst_56 = arith.constant dense<0.000000e+00> : vector<16x16xf32>
    %111 = tpu.matmul %106, %108, %cst_56 {dimension_numbers = #tpu.dot_dimension_numbers<[1], [1], [0], [0], [0, 0, 1, 0], [], []>} : vector<16x128xbf16>, vector<16x128xbf16>, vector<16x16xf32> -> vector<16x16xf32>
    %c1_57 = arith.constant 1 : index
    %c0_58 = arith.constant 0 : index
    %c0_59 = arith.constant 0 : index
    %112 = vector.load %arg4[%c1_57, %c0_58, %c0_59] : memref<2x1x16xi32, #tpu.memory_space<vmem>>, vector<1x1x16xi32>
    %113 = vector.shape_cast %112 : vector<1x1x16xi32> to vector<1x16xi32>
    %c0_i32_60 = arith.constant 0 : i32
    %114 = vector.broadcast %c0_i32_60 : i32 to vector<1x16xi32>
    %115 = arith.cmpi sgt, %113, %114 : vector<1x16xi32>
    %116 = vector.broadcast %115 : vector<1x16xi1> to vector<16x16xi1>
    %117 = arith.andi %75, %116 : vector<16x16xi1>
    %cst_61 = arith.constant -1.000000e+30 : f32
    %118 = vector.broadcast %cst_61 : f32 to vector<16x16xf32>
    %119 = arith.select %117, %111, %118 : vector<16x16xi1>, vector<16x16xf32>
    %cst_62 = arith.constant dense<0xFF800000> : vector<16xf32>
    %120 = vector.multi_reduction <maximumf>, %119, %cst_62 [1] : vector<16x16xf32> to vector<16xf32>
    %121 = vector.shape_cast %120 : vector<16xf32> to vector<16x1xf32>
    %122 = vector.broadcast %121 : vector<16x1xf32> to vector<16x16xf32>
    %123 = arith.subf %119, %122 : vector<16x16xf32>
    %124 = math.exp %123 : vector<16x16xf32>
    %cst_63 = arith.constant dense<0.000000e+00> : vector<16xf32>
    %125 = vector.multi_reduction <add>, %124, %cst_63 [1] : vector<16x16xf32> to vector<16xf32>
    %126 = vector.shape_cast %125 : vector<16xf32> to vector<16x1xf32>
    %127 = tpu.reciprocal %126 {approx = true} : vector<16x1xf32> -> vector<16x1xf32>
    %128 = vector.broadcast %127 : vector<16x1xf32> to vector<16x16xf32>
    %129 = arith.mulf %124, %128 : vector<16x16xf32>
    %130 = arith.truncf %129 : vector<16x16xf32> to vector<16x16xbf16>
    %cst_64 = arith.constant dense<0.000000e+00> : vector<16x128xf32>
    %131 = tpu.matmul %130, %110, %cst_64 {dimension_numbers = #tpu.dot_dimension_numbers<[1], [0], [0], [1], [0, 0, 1, 1], [], []>} : vector<16x16xbf16>, vector<16x128xbf16>, vector<16x128xf32> -> vector<16x128xf32>
    %132 = arith.truncf %131 : vector<16x128xf32> to vector<16x128xbf16>
    %c16_65 = arith.constant 16 : index
    %c0_66 = arith.constant 0 : index
    %133 = vector.load %arg17[%c16_65, %c0_66] : memref<32x128xbf16, #tpu.memory_space<vmem>>, vector<16x128xbf16>
    tpu.vector_store %arg17[%c16_65, %c0_66], %132 {strides = array<i32>} : memref<32x128xbf16, #tpu.memory_space<vmem>>, vector<16x128xbf16>,
    %c0_67 = arith.constant 0 : index
    %c0_68 = arith.constant 0 : index
    %134 = vector.load %arg16[%c0_67, %c0_68] : memref<32x128xf32, #tpu.memory_space<vmem>>, vector<32x128xf32>
    %c0_69 = arith.constant 0 : index
    %c0_70 = arith.constant 0 : index
    %135 = vector.load %arg17[%c0_69, %c0_70] : memref<32x128xbf16, #tpu.memory_space<vmem>>, vector<32x128xbf16>
    %c0_71 = arith.constant 0 : index
    %c0_72 = arith.constant 0 : index
    %136 = vector.load %arg11[%c0_71, %c0_72] : memref<128x128xbf16, #tpu.memory_space<vmem>>, vector<128x128xbf16>
    %cst_73 = arith.constant dense<0.000000e+00> : vector<32x128xf32>
    %137 = tpu.matmul %135, %136, %cst_73 {dimension_numbers = #tpu.dot_dimension_numbers<[1], [0], [0], [1], [0, 0, 1, 1], [], []>} : vector<32x128xbf16>, vector<128x128xbf16>, vector<32x128xf32> -> vector<32x128xf32>
    %138 = arith.addf %134, %137 : vector<32x128xf32>
    %139 = arith.truncf %138 : vector<32x128xf32> to vector<32x128xbf16>
    %c0_74 = arith.constant 0 : index
    %c0_75 = arith.constant 0 : index
    %140 = vector.load %arg12[%c0_74, %c0_75] : memref<128x128xbf16, #tpu.memory_space<vmem>>, vector<128x128xbf16>
    %cst_76 = arith.constant dense<0.000000e+00> : vector<32x128xf32>
    %141 = tpu.matmul %139, %140, %cst_76 {dimension_numbers = #tpu.dot_dimension_numbers<[1], [0], [0], [1], [0, 0, 1, 1], [], []>} : vector<32x128xbf16>, vector<128x128xbf16>, vector<32x128xf32> -> vector<32x128xf32>
    %c0_77 = arith.constant 0 : index
    %c0_78 = arith.constant 0 : index
    %142 = vector.load %arg13[%c0_77, %c0_78] : memref<1x128xf32, #tpu.memory_space<vmem>>, vector<1x128xf32>
    %143 = vector.broadcast %142 : vector<1x128xf32> to vector<32x128xf32>
    %144 = arith.addf %141, %143 : vector<32x128xf32>
    %c0_79 = arith.constant 0 : index
    %c0_80 = arith.constant 0 : index
    %145 = vector.load %arg14[%c0_79, %c0_80] : memref<32x128xf32, #tpu.memory_space<vmem>>, vector<32x128xf32>
    tpu.vector_store %arg14[%c0_79, %c0_80], %144 {strides = array<i32>} : memref<32x128xf32, #tpu.memory_space<vmem>>, vector<32x128xf32>,
    %c0_81 = arith.constant 0 : index
    %c0_82 = arith.constant 0 : index
    %146 = vector.load %arg5[%c0_81, %c0_82] : memref<32x1xi32, #tpu.memory_space<vmem>>, vector<32x1xi32>
    %c-100_i32 = arith.constant -100 : i32
    %147 = vector.broadcast %c-100_i32 : i32 to vector<32x1xi32>
    %148 = arith.cmpi ne, %146, %147 : vector<32x1xi32>
    %c0_i32_83 = arith.constant 0 : i32
    %149 = vector.broadcast %c0_i32_83 : i32 to vector<32x1xi32>
    %150 = arith.select %148, %146, %149 : vector<32x1xi1>, vector<32x1xi32>
    %151 = tpu.iota {dimensions = array<i32: 1>} : vector<32x128xi32>
    %152 = vector.broadcast %150 : vector<32x1xi32> to vector<32x128xi32>
    %153 = arith.cmpi eq, %151, %152 : vector<32x128xi32>
    %154 = arith.extui %153 : vector<32x128xi1> to vector<32x128xi32>
    %155 = arith.sitofp %154 : vector<32x128xi32> to vector<32x128xf32>
    %cst_84 = arith.constant dense<0xFF800000> : vector<32xf32>
    %156 = vector.multi_reduction <maximumf>, %144, %cst_84 [1] : vector<32x128xf32> to vector<32xf32>
    %157 = vector.shape_cast %156 : vector<32xf32> to vector<32x1xf32>
    %158 = vector.broadcast %157 : vector<32x1xf32> to vector<32x128xf32>
    %159 = arith.subf %144, %158 : vector<32x128xf32>
    %160 = math.exp %159 : vector<32x128xf32>
    %cst_85 = arith.constant dense<0.000000e+00> : vector<32xf32>
    %161 = vector.multi_reduction <add>, %160, %cst_85 [1] : vector<32x128xf32> to vector<32xf32>
    %162 = vector.shape_cast %161 : vector<32xf32> to vector<32x1xf32>
    %163 = math.log %162 : vector<32x1xf32>
    %164 = arith.addf %157, %163 : vector<32x1xf32>
    %165 = arith.mulf %144, %155 : vector<32x128xf32>
    %cst_86 = arith.constant dense<0.000000e+00> : vector<32xf32>
    %166 = vector.multi_reduction <add>, %165, %cst_86 [1] : vector<32x128xf32> to vector<32xf32>
    %167 = vector.shape_cast %166 : vector<32xf32> to vector<32x1xf32>
    %168 = arith.subf %164, %167 : vector<32x1xf32>
    %169 = arith.extui %148 : vector<32x1xi1> to vector<32x1xi32>
    %170 = arith.sitofp %169 : vector<32x1xi32> to vector<32x1xf32>
    %171 = arith.mulf %168, %170 : vector<32x1xf32>
    %cst_87 = arith.constant dense<0.000000e+00> : vector<1xf32>
    %172 = vector.multi_reduction <add>, %171, %cst_87 [0] : vector<32x1xf32> to vector<1xf32>
    %173 = vector.shape_cast %172 : vector<1xf32> to vector<1x1xf32>
    %c0_88 = arith.constant 0 : index
    %c0_89 = arith.constant 0 : index
    %c0_90 = arith.constant 0 : index
    %174 = vector.load %arg15[%c0_88, %c0_89, %c0_90] : memref<1x1x1xf32, #tpu.memory_space<vmem>>, vector<1x1x1xf32>
    %175 = vector.shape_cast %174 : vector<1x1x1xf32> to vector<1x1xf32>
    %176 = vector.shape_cast %173 : vector<1x1xf32> to vector<1x1x1xf32>
    tpu.vector_store %arg15[%c0_88, %c0_89, %c0_90], %176 {strides = array<i32>} : memref<1x1x1xf32, #tpu.memory_space<vmem>>, vector<1x1x1xf32>,
    return
  }
  func.func @transform_0(%arg0: i32) -> (i32, i32, i32) {
    %c0_i32 = arith.constant 0 : i32
    %c0_i32_0 = arith.constant 0 : i32
    %c0_i32_1 = arith.constant 0 : i32
    return %arg0, %c0_i32, %c0_i32_0 : i32, i32, i32
  }
  func.func @transform_1(%arg0: i32) -> (i32, i32) {
    %c0_i32 = arith.constant 0 : i32
    %c0_i32_0 = arith.constant 0 : i32
    return %arg0, %c0_i32 : i32, i32
  }
  func.func @transform_2(%arg0: i32) -> (i32, i32) {
    %c0_i32 = arith.constant 0 : i32
    %c0_i32_0 = arith.constant 0 : i32
    return %arg0, %c0_i32 : i32, i32
  }
  func.func @transform_3(%arg0: i32) -> (i32, i32, i32) {
    %c0_i32 = arith.constant 0 : i32
    %c0_i32_0 = arith.constant 0 : i32
    %c0_i32_1 = arith.constant 0 : i32
    return %arg0, %c0_i32, %c0_i32_0 : i32, i32, i32
  }
  func.func @transform_4(%arg0: i32) -> (i32, i32) {
    %c0_i32 = arith.constant 0 : i32
    %c0_i32_0 = arith.constant 0 : i32
    return %arg0, %c0_i32 : i32, i32
  }
  func.func @transform_5(%arg0: i32) -> (i32, i32) {
    %c0_i32 = arith.constant 0 : i32
    %c0_i32_0 = arith.constant 0 : i32
    %c0_i32_1 = arith.constant 0 : i32
    return %c0_i32, %c0_i32_0 : i32, i32
  }
  func.func @transform_6(%arg0: i32) -> (i32, i32) {
    %c0_i32 = arith.constant 0 : i32
    %c0_i32_0 = arith.constant 0 : i32
    %c0_i32_1 = arith.constant 0 : i32
    return %c0_i32, %c0_i32_0 : i32, i32
  }
  func.func @transform_7(%arg0: i32) -> (i32, i32) {
    %c0_i32 = arith.constant 0 : i32
    %c0_i32_0 = arith.constant 0 : i32
    %c0_i32_1 = arith.constant 0 : i32
    return %c0_i32, %c0_i32_0 : i32, i32
  }
  func.func @transform_8(%arg0: i32) -> (i32, i32) {
    %c0_i32 = arith.constant 0 : i32
    %c0_i32_0 = arith.constant 0 : i32
    %c0_i32_1 = arith.constant 0 : i32
    return %c0_i32, %c0_i32_0 : i32, i32
  }
  func.func @transform_9(%arg0: i32) -> (i32, i32) {
    %c0_i32 = arith.constant 0 : i32
    %c0_i32_0 = arith.constant 0 : i32
    %c0_i32_1 = arith.constant 0 : i32
    return %c0_i32, %c0_i32_0 : i32, i32
  }
  func.func @transform_10(%arg0: i32) -> (i32, i32) {
    %c0_i32 = arith.constant 0 : i32
    %c0_i32_0 = arith.constant 0 : i32
    %c0_i32_1 = arith.constant 0 : i32
    return %c0_i32, %c0_i32_0 : i32, i32
  }
  func.func @transform_11(%arg0: i32) -> (i32, i32) {
    %c0_i32 = arith.constant 0 : i32
    %c0_i32_0 = arith.constant 0 : i32
    %c0_i32_1 = arith.constant 0 : i32
    return %c0_i32, %c0_i32_0 : i32, i32
  }
  func.func @transform_12(%arg0: i32) -> (i32, i32) {
    %c0_i32 = arith.constant 0 : i32
    %c0_i32_0 = arith.constant 0 : i32
    %c0_i32_1 = arith.constant 0 : i32
    return %c0_i32, %c0_i32_0 : i32, i32
  }
  func.func @transform_13(%arg0: i32) -> (i32, i32) {
    %c0_i32 = arith.constant 0 : i32
    %c0_i32_0 = arith.constant 0 : i32
    return %arg0, %c0_i32 : i32, i32
  }
  func.func @transform_14(%arg0: i32) -> (i32, i32, i32) {
    %c0_i32 = arith.constant 0 : i32
    %c0_i32_0 = arith.constant 0 : i32
    %c0_i32_1 = arith.constant 0 : i32
    return %arg0, %c0_i32, %c0_i32_0 : i32, i32, i32
  }
}

</mosaic_0001>

<llo_original>
// kernel: _lambda_.1
$region0: #{_lambda_.1}
  #allocation0 [shape = 'u32[]', space=smem, size = 0x4, offset = 0x4, fixed_abs, tag = 'smem constant byte address 0x4 - core index']
  #allocation1 [shape = 'u32[144,128]{1,0:T(1,128)}', space=vmem, size = 0x12000, scoped, tag = 'internal scratch']
  #allocation2 [shape = 'f32[32,128]{1,0:T(8,128)}', space=vmem, size = 0x4000, scoped, tag = 'scratch operand']
  #allocation3 [shape = 'bf16[32,128]{1,0:T(8,128)(2,1)}', space=vmem, size = 0x2000, scoped, tag = 'scratch operand']
  %s0 = inlined_call_operand.vmem [shape: bf16[2,4,256], index: 0, kind: input, shape index: {}]
  %s1 = inlined_call_operand.vmem [shape: bf16[16,128], index: 1, kind: input, shape index: {}]
  %s2 = inlined_call_operand.vmem [shape: bf16[16,128], index: 2, kind: input, shape index: {}]
  %s3 = inlined_call_operand.vmem [shape: s32[2,1,16], index: 3, kind: input, shape index: {}]
  %s4 = inlined_call_operand.vmem [shape: s32[32,1], index: 4, kind: input, shape index: {}]
  %s5 = inlined_call_operand.vmem [shape: bf16[256,256], index: 5, kind: input, shape index: {}]
  %s6 = inlined_call_operand.vmem [shape: f32[1,256], index: 6, kind: input, shape index: {}]
  %s7 = inlined_call_operand.vmem [shape: bf16[128,128], index: 7, kind: input, shape index: {}]
  %s8 = inlined_call_operand.vmem [shape: bf16[128,128], index: 8, kind: input, shape index: {}]
  %s9 = inlined_call_operand.vmem [shape: bf16[128,384], index: 9, kind: input, shape index: {}]
  %s10 = inlined_call_operand.vmem [shape: bf16[128,128], index: 10, kind: input, shape index: {}]
  %s11 = inlined_call_operand.vmem [shape: bf16[128,128], index: 11, kind: input, shape index: {}]
  %s12 = inlined_call_operand.vmem [shape: f32[1,128], index: 12, kind: input, shape index: {}]
  %s13 = inlined_call_operand.hbm [shape: f32[32,128], index: 13, kind: output, shape index: {0}]
  %s14 = inlined_call_operand.hbm [shape: f32[1,1,1], index: 14, kind: output, shape index: {1}]
  %15 = xla_tuple %s13, %s14
  %s16 = sld [smem:[#allocation0]]
  $region70: #{_lambda_.1} parent=0
    _
  %s18 = ssub.s32 1, %s16
  %s19 = scalar_select 0, %s18, %s16
  $region1: #{_lambda_.1} parent=0
    #allocation4 [shape = 'u8[16384]{0}', space=vmem, size = 0x4000, scoped, tag = 'output window, operand 0, single buffered']
    #allocation5 [shape = 's32[1]{0}', space=sflag, size = 0x4, scoped, tag = 'scoped memory for _lambda_.1']
    #allocation6 [shape = 'u8[512]{0}', space=vmem, size = 0x400, scoped, tag = 'output window, operand 1, single buffered']
    #allocation7 [shape = 's32[1]{0}', space=sflag, size = 0x4, scoped, tag = 'scoped memory for _lambda_.1']
    %20 = vsyncpa [#allocation5], 0
    %21 = vsyncpa [#allocation7], 0
    // Predicated region
    $region2: #{_lambda_.1} parent=1 // pred_check
      _
    $region3: #{_lambda_.1} parent=1 // pred_check_branch
      %23 = sbr.rel (0) target = $region5
    $region4: #{_lambda_.1} parent=1 // pred_region
      _
    $region5: #{_lambda_.1} parent=1 // pred_fallthru
      _
    // Predicated region
    $region6: #{_lambda_.1} parent=1 // pred_check
      _
    $region7: #{_lambda_.1} parent=1 // pred_check_branch
      %25 = sbr.rel (0) target = $region9
    $region8: #{_lambda_.1} parent=1 // pred_region
      _
    $region9: #{_lambda_.1} parent=1 // pred_fallthru
      _
    // Predicated region
    $region10: #{_lambda_.1} parent=1 // pred_check
      _
    $region11: #{_lambda_.1} parent=1 // pred_check_branch
      %27 = sbr.rel (0) target = $region13
    $region12: #{_lambda_.1} parent=1 // pred_region
      _
    $region13: #{_lambda_.1} parent=1 // pred_fallthru
      _
    // Predicated region
    $region14: #{_lambda_.1} parent=1 // pred_check
      _
    $region15: #{_lambda_.1} parent=1 // pred_check_branch
      %29 = sbr.rel (0) target = $region17
    $region16: #{_lambda_.1} parent=1 // pred_region
      _
    $region17: #{_lambda_.1} parent=1 // pred_fallthru
      _
    // Predicated region
    $region18: #{_lambda_.1} parent=1 // pred_check
      _
    $region19: #{_lambda_.1} parent=1 // pred_check_branch
      %31 = sbr.rel (0) target = $region21
    $region20: #{_lambda_.1} parent=1 // pred_region
      _
    $region21: #{_lambda_.1} parent=1 // pred_fallthru
      _
    // Predicated region
    $region22: #{_lambda_.1} parent=1 // pred_check
      _
    $region23: #{_lambda_.1} parent=1 // pred_check_branch
      %33 = sbr.rel (0) target = $region25
    $region24: #{_lambda_.1} parent=1 // pred_region
      _
    $region25: #{_lambda_.1} parent=1 // pred_fallthru
      _
    // Predicated region
    $region26: #{_lambda_.1} parent=1 // pred_check
      _
    $region27: #{_lambda_.1} parent=1 // pred_check_branch
      %35 = sbr.rel (0) target = $region29
    $region28: #{_lambda_.1} parent=1 // pred_region
      _
    $region29: #{_lambda_.1} parent=1 // pred_fallthru
      _
    // Predicated region
    $region30: #{_lambda_.1} parent=1 // pred_check
      _
    $region31: #{_lambda_.1} parent=1 // pred_check_branch
      %37 = sbr.rel (0) target = $region33
    $region32: #{_lambda_.1} parent=1 // pred_region
      _
    $region33: #{_lambda_.1} parent=1 // pred_fallthru
      _
    // Predicated region
    $region34: #{_lambda_.1} parent=1 // pred_check
      _
    $region35: #{_lambda_.1} parent=1 // pred_check_branch
      %39 = sbr.rel (0) target = $region37
    $region36: #{_lambda_.1} parent=1 // pred_region
      _
    $region37: #{_lambda_.1} parent=1 // pred_fallthru
      _
    // Predicated region
    $region38: #{_lambda_.1} parent=1 // pred_check
      _
    $region39: #{_lambda_.1} parent=1 // pred_check_branch
      %41 = sbr.rel (0) target = $region41
    $region40: #{_lambda_.1} parent=1 // pred_region
      _
    $region41: #{_lambda_.1} parent=1 // pred_fallthru
      _
    // Predicated region
    $region42: #{_lambda_.1} parent=1 // pred_check
      _
    $region43: #{_lambda_.1} parent=1 // pred_check_branch
      %43 = sbr.rel (0) target = $region45
    $region44: #{_lambda_.1} parent=1 // pred_region
      _
    $region45: #{_lambda_.1} parent=1 // pred_fallthru
      _
    // Predicated region
    $region46: #{_lambda_.1} parent=1 // pred_check
      _
    $region47: #{_lambda_.1} parent=1 // pred_check_branch
      %45 = sbr.rel (0) target = $region49
    $region48: #{_lambda_.1} parent=1 // pred_region
      _
    $region49: #{_lambda_.1} parent=1 // pred_fallthru
      _
    // Predicated region
    $region50: #{_lambda_.1} parent=1 // pred_check
      _
    $region51: #{_lambda_.1} parent=1 // pred_check_branch
      %47 = sbr.rel (0) target = $region53
    $region52: #{_lambda_.1} parent=1 // pred_region
      _
    $region53: #{_lambda_.1} parent=1 // pred_fallthru
      _
    %v49 = vld [vmem:[%s1] sm:$0xf]
    %v50 = vld [vmem:[%s1 + $0x4] sm:$0xf]
    %v51 = vld [vmem:[%s7] sm:$0xf]
    %v52 = vld [vmem:[%s7 + $0x4] sm:$0xf]
    %v53 = vld [vmem:[%s7 + $0x8] sm:$0xf]
    %v54 = vld [vmem:[%s7 + $0xc] sm:$0xf]
    %v55 = vld [vmem:[%s7 + $0x10] sm:$0xf]
    %v56 = vld [vmem:[%s7 + $0x14] sm:$0xf]
    %v57 = vld [vmem:[%s7 + $0x18] sm:$0xf]
    %v58 = vld [vmem:[%s7 + $0x1c] sm:$0xf]
    %v59 = vld [vmem:[%s7 + $0x20] sm:$0xf]
    %v60 = vld [vmem:[%s7 + $0x24] sm:$0xf]
    %v61 = vld [vmem:[%s7 + $0x28] sm:$0xf]
    %v62 = vld [vmem:[%s7 + $0x2c] sm:$0xf]
    %v63 = vld [vmem:[%s7 + $0x30] sm:$0xf]
    %v64 = vld [vmem:[%s7 + $0x34] sm:$0xf]
    %v65 = vld [vmem:[%s7 + $0x38] sm:$0xf]
    %v66 = vld [vmem:[%s7 + $0x3c] sm:$0xf]
    %v69 = vunpack.c.l.b16 %v49
    %v70 = vunpack.c.l.b16 %v50
    %v71 = vpack.c.b16 %v70, %v69
    %v89 = vunpack.c.l.b16 %v51
    %v90 = vunpack.c.l.b16 %v52
    %v91 = vunpack.c.l.b16 %v53
    %v92 = vunpack.c.l.b16 %v54
    %v93 = vunpack.c.l.b16 %v55
    %v94 = vunpack.c.l.b16 %v56
    %v95 = vunpack.c.l.b16 %v57
    %v96 = vunpack.c.l.b16 %v58
    %v97 = vunpack.c.l.b16 %v59
    %v98 = vunpack.c.l.b16 %v60
    %v99 = vunpack.c.l.b16 %v61
    %v100 = vunpack.c.l.b16 %v62
    %v101 = vunpack.c.l.b16 %v63
    %v102 = vunpack.c.l.b16 %v64
    %v103 = vunpack.c.l.b16 %v65
    %v104 = vunpack.c.l.b16 %v66
    %v105 = vpack.c.b16 %v90, %v89
    %v106 = vpack.c.b16 %v92, %v91
    %v107 = vpack.c.b16 %v94, %v93
    %v108 = vpack.c.b16 %v96, %v95
    %v109 = vpack.c.b16 %v98, %v97
    %v110 = vpack.c.b16 %v100, %v99
    %v111 = vpack.c.b16 %v102, %v101
    %v112 = vpack.c.b16 %v104, %v103
    %121 = vmatprep.subr.bf16.mxu0 0
    %122 = vmatpush1.bf16.msra.mxu0 %v112
    %123 = vmatprep.subr.bf16.mxu0 0
    %124 = vmatpush1.bf16.msra.mxu0 %v111
    %125 = vmatprep.subr.bf16.mxu0 0
    %126 = vmatpush1.bf16.msra.mxu0 %v110
    %127 = vmatprep.subr.bf16.mxu0 0
    %128 = vmatpush1.bf16.msra.mxu0 %v109
    %129 = vmatprep.subr.bf16.mxu0 0
    %130 = vmatpush1.bf16.msra.mxu0 %v108
    %131 = vmatprep.subr.bf16.mxu0 0
    %132 = vmatpush1.bf16.msra.mxu0 %v107
    %133 = vmatprep.subr.bf16.mxu0 0
    %134 = vmatpush1.bf16.msra.mxu0 %v106
    %135 = vmatprep.subr.bf16.mxu0 0
    %136 = vmatpush1.bf16.msra.mxu0 %v105
    %137 = vmatprep.subr.bf16.mxu0 0
    %138 = vmatpush2.bf16.msra.mxu0 0
    %139 = vmatprep.subr.bf16.mxu0 0
    %140 = vmatpush2.bf16.msra.mxu0 0
    %141 = vmatprep.subr.bf16.mxu0 0
    %142 = vmatpush2.bf16.msra.mxu0 0
    %143 = vmatprep.subr.bf16.mxu0 0
    %144 = vmatpush2.bf16.msra.mxu0 0
    %145 = vmatprep.subr.bf16.mxu0 0
    %146 = vmatpush2.bf16.msra.mxu0 0
    %147 = vmatprep.subr.bf16.mxu0 0
    %148 = vmatpush2.bf16.msra.mxu0 0
    %149 = vmatprep.subr.bf16.mxu0 0
    %150 = vmatpush2.bf16.msra.mxu0 0
    %151 = vmatprep.subr.bf16.mxu0 0
    %152 = vmatpush2.bf16.msra.mxu0 0
    %153 = vmatprep.mubr.bf16.mxu0 0
    %154 = vmatmul.mubr.bf16.gmra.mxu0 %v71
    %v155 = vpop.f32.mrf.mxu0
    %v156 = vadd.f32 0.0, %v155
    %v157 = vpop.f32.mrf.mxu0
    %v158 = vpop.f32.mrf.mxu0
    %v159 = vadd.f32 0.0, %v158
    %v160 = vpop.f32.mrf.mxu0
    %161 = vdwg.mxu0
    %v162 = vld [vmem:[%s0] sm:$0xf]
    %v163 = vld [vmem:[%s5] sm:$0xff]
    %v164 = vld [vmem:[%s5 + $0x8] sm:$0xff]
    %v165 = vld [vmem:[%s5 + $0x10] sm:$0xff]
    %v166 = vld [vmem:[%s5 + $0x18] sm:$0xff]
    %v167 = vld [vmem:[%s5 + $0x20] sm:$0xff]
    %v168 = vld [vmem:[%s5 + $0x28] sm:$0xff]
    %v169 = vld [vmem:[%s5 + $0x30] sm:$0xff]
    %v170 = vld [vmem:[%s5 + $0x38] sm:$0xff]
    %v171 = vld [vmem:[%s5 + $0x40] sm:$0xff]
    %v172 = vld [vmem:[%s5 + $0x48] sm:$0xff]
    %v173 = vld [vmem:[%s5 + $0x50] sm:$0xff]
    %v174 = vld [vmem:[%s5 + $0x58] sm:$0xff]
    %v175 = vld [vmem:[%s5 + $0x60] sm:$0xff]
    %v176 = vld [vmem:[%s5 + $0x68] sm:$0xff]
    %v177 = vld [vmem:[%s5 + $0x70] sm:$0xff]
    %v178 = vld [vmem:[%s5 + $0x78] sm:$0xff]
    %v179 = vld [vmem:[%s5 + $0x80] sm:$0xff]
    %v180 = vld [vmem:[%s5 + $0x88] sm:$0xff]
    %v181 = vld [vmem:[%s5 + $0x90] sm:$0xff]
    %v182 = vld [vmem:[%s5 + $0x98] sm:$0xff]
    %v183 = vld [vmem:[%s5 + $0xa0] sm:$0xff]
    %v184 = vld [vmem:[%s5 + $0xa8] sm:$0xff]
    %v185 = vld [vmem:[%s5 + $0xb0] sm:$0xff]
    %v186 = vld [vmem:[%s5 + $0xb8] sm:$0xff]
    %v187 = vld [vmem:[%s5 + $0xc0] sm:$0xff]
    %v188 = vld [vmem:[%s5 + $0xc8] sm:$0xff]
    %v189 = vld [vmem:[%s5 + $0xd0] sm:$0xff]
    %v190 = vld [vmem:[%s5 + $0xd8] sm:$0xff]
    %v191 = vld [vmem:[%s5 + $0xe0] sm:$0xff]
    %v192 = vld [vmem:[%s5 + $0xe8] sm:$0xff]
    %v193 = vld [vmem:[%s5 + $0xf0] sm:$0xff]
    %v194 = vld [vmem:[%s5 + $0xf8] sm:$0xff]
    %v195 = vld [vmem:[%s6] sm:$0x3]
    %v197 = vlaneseq
    %v198 = vshrl.u32 %v197, 7
    %v199 = vsub.s32 0, %v198
    %v200 = vrot.slane %v195, %v199
    %v201 = vlaneseq
    %v202 = vshrl.u32 %v201, 7
    %v203 = vsub.s32 1, %v202
    %v204 = vrot.slane %v195, %v203
    %v209 = vunpack.c.l.s4 1983009808
    %v210 = vunpack.c.0.s8 %v209
    %v211 = vlaneseq
    %v212 = vshrl.u32 %v211, 7
    %v213 = vsub.s32 %v210, %v212
    %v214 = vrot.slane %v162, %v213
    %v215 = vcombine.high %v214, %v214
    %v250 = vunpack.c.l.b16 %v163
    %v251 = vunpack.c.h.b16 %v163
    %v252 = vunpack.c.l.b16 %v164
    %v253 = vunpack.c.h.b16 %v164
    %v254 = vunpack.c.l.b16 %v165
    %v255 = vunpack.c.h.b16 %v165
    %v256 = vunpack.c.l.b16 %v166
    %v257 = vunpack.c.h.b16 %v166
    %v258 = vunpack.c.l.b16 %v167
    %v259 = vunpack.c.h.b16 %v167
    %v260 = vunpack.c.l.b16 %v168
    %v261 = vunpack.c.h.b16 %v168
    %v262 = vunpack.c.l.b16 %v169
    %v263 = vunpack.c.h.b16 %v169
    %v264 = vunpack.c.l.b16 %v170
    %v265 = vunpack.c.h.b16 %v170
    %v266 = vunpack.c.l.b16 %v171
    %v267 = vunpack.c.h.b16 %v171
    %v268 = vunpack.c.l.b16 %v172
    %v269 = vunpack.c.h.b16 %v172
    %v270 = vunpack.c.l.b16 %v173
    %v271 = vunpack.c.h.b16 %v173
    %v272 = vunpack.c.l.b16 %v174
    %v273 = vunpack.c.h.b16 %v174
    %v274 = vunpack.c.l.b16 %v175
    %v275 = vunpack.c.h.b16 %v175
    %v276 = vunpack.c.l.b16 %v176
    %v277 = vunpack.c.h.b16 %v176
    %v278 = vunpack.c.l.b16 %v177
    %v279 = vunpack.c.h.b16 %v177
    %v280 = vunpack.c.l.b16 %v178
    %v281 = vunpack.c.h.b16 %v178
    %v282 = vunpack.c.l.b16 %v179
    %v283 = vunpack.c.h.b16 %v179
    %v284 = vunpack.c.l.b16 %v180
    %v285 = vunpack.c.h.b16 %v180
    %v286 = vunpack.c.l.b16 %v181
    %v287 = vunpack.c.h.b16 %v181
    %v288 = vunpack.c.l.b16 %v182
    %v289 = vunpack.c.h.b16 %v182
    %v290 = vunpack.c.l.b16 %v183
    %v291 = vunpack.c.h.b16 %v183
    %v292 = vunpack.c.l.b16 %v184
    %v293 = vunpack.c.h.b16 %v184
    %v294 = vunpack.c.l.b16 %v185
    %v295 = vunpack.c.h.b16 %v185
    %v296 = vunpack.c.l.b16 %v186
    %v297 = vunpack.c.h.b16 %v186
    %v298 = vunpack.c.l.b16 %v187
    %v299 = vunpack.c.h.b16 %v187
    %v300 = vunpack.c.l.b16 %v188
    %v301 = vunpack.c.h.b16 %v188
    %v302 = vunpack.c.l.b16 %v189
    %v303 = vunpack.c.h.b16 %v189
    %v304 = vunpack.c.l.b16 %v190
    %v305 = vunpack.c.h.b16 %v190
    %v306 = vunpack.c.l.b16 %v191
    %v307 = vunpack.c.h.b16 %v191
    %v308 = vunpack.c.l.b16 %v192
    %v309 = vunpack.c.h.b16 %v192
    %v310 = vunpack.c.l.b16 %v193
    %v311 = vunpack.c.h.b16 %v193
    %v312 = vunpack.c.l.b16 %v194
    %v313 = vunpack.c.h.b16 %v194
    %v314 = vpack.c.b16 %v252, %v250
    %v315 = vpack.c.b16 %v253, %v251
    %v316 = vpack.c.b16 %v256, %v254
    %v317 = vpack.c.b16 %v257, %v255
    %v318 = vpack.c.b16 %v260, %v258
    %v319 = vpack.c.b16 %v261, %v259
    %v320 = vpack.c.b16 %v264, %v262
    %v321 = vpack.c.b16 %v265, %v263
    %v322 = vpack.c.b16 %v268, %v266
    %v323 = vpack.c.b16 %v269, %v267
    %v324 = vpack.c.b16 %v272, %v270
    %v325 = vpack.c.b16 %v273, %v271
    %v326 = vpack.c.b16 %v276, %v274
    %v327 = vpack.c.b16 %v277, %v275
    %v328 = vpack.c.b16 %v280, %v278
    %v329 = vpack.c.b16 %v281, %v279
    %v330 = vpack.c.b16 %v284, %v282
    %v331 = vpack.c.b16 %v285, %v283
    %v332 = vpack.c.b16 %v288, %v286
    %v333 = vpack.c.b16 %v289, %v287
    %v334 = vpack.c.b16 %v292, %v290
    %v335 = vpack.c.b16 %v293, %v291
    %v336 = vpack.c.b16 %v296, %v294
    %v337 = vpack.c.b16 %v297, %v295
    %v338 = vpack.c.b16 %v300, %v298
    %v339 = vpack.c.b16 %v301, %v299
    %v340 = vpack.c.b16 %v304, %v302
    %v341 = vpack.c.b16 %v305, %v303
    %v342 = vpack.c.b16 %v308, %v306
    %v343 = vpack.c.b16 %v309, %v307
    %v344 = vpack.c.b16 %v312, %v310
    %v345 = vpack.c.b16 %v313, %v311
    %378 = vmatprep.subr.bf16.mxu0 %v329
    %379 = vmatpush1.bf16.msra.mxu0 %v328
    %380 = vmatprep.subr.bf16.mxu0 %v327
    %381 = vmatpush1.bf16.msra.mxu0 %v326
    %382 = vmatprep.subr.bf16.mxu0 %v325
    %383 = vmatpush1.bf16.msra.mxu0 %v324
    %384 = vmatprep.subr.bf16.mxu0 %v323
    %385 = vmatpush1.bf16.msra.mxu0 %v322
    %386 = vmatprep.subr.bf16.mxu0 %v321
    %387 = vmatpush1.bf16.msra.mxu0 %v320
    %388 = vmatprep.subr.bf16.mxu0 %v319
    %389 = vmatpush1.bf16.msra.mxu0 %v318
    %390 = vmatprep.subr.bf16.mxu0 %v317
    %391 = vmatpush1.bf16.msra.mxu0 %v316
    %392 = vmatprep.subr.bf16.mxu0 %v315
    %393 = vmatpush1.bf16.msra.mxu0 %v314
    %394 = vmatprep.subr.bf16.mxu0 %v345
    %395 = vmatpush2.bf16.msra.mxu0 %v344
    %396 = vmatprep.subr.bf16.mxu0 %v343
    %397 = vmatpush2.bf16.msra.mxu0 %v342
    %398 = vmatprep.subr.bf16.mxu0 %v341
    %399 = vmatpush2.bf16.msra.mxu0 %v340
    %400 = vmatprep.subr.bf16.mxu0 %v339
    %401 = vmatpush2.bf16.msra.mxu0 %v338
    %402 = vmatprep.subr.bf16.mxu0 %v337
    %403 = vmatpush2.bf16.msra.mxu0 %v336
    %404 = vmatprep.subr.bf16.mxu0 %v335
    %405 = vmatpush2.bf16.msra.mxu0 %v334
    %406 = vmatprep.subr.bf16.mxu0 %v333
    %407 = vmatpush2.bf16.msra.mxu0 %v332
    %408 = vmatprep.subr.bf16.mxu0 %v331
    %409 = vmatpush2.bf16.msra.mxu0 %v330
    %410 = vmatprep.mubr.bf16.mxu0 %v215
    %411 = vmatmul.mubr.bf16.gmra.mxu0 %v214
    %v412 = vpop.f32.mrf.mxu0
    %v413 = vadd.f32 %v200, %v412
    %v414 = vpop.f32.mrf.mxu0
    %v415 = vadd.f32 %v204, %v414
    %v416 = vpop.f32.mrf.mxu0
    %v417 = vpop.f32.mrf.mxu0
    %418 = vdwg.mxu0
    %v419 = vpack.c.bf16 %v413, %v413
    %v420 = vpack.c.bf16 %v415, %v415
    %v421 = vpack.c.bf16 %v156, %v156
    %422 = vmatprep.subr.bf16.mxu0 0
    %423 = vmatpush1.bf16.xpose.msra.mxu0 0
    %424 = vmatprep.subr.bf16.mxu0 0
    %425 = vmatpush1.bf16.xpose.msra.mxu0 0
    %426 = vmatprep.subr.bf16.mxu0 0
    %427 = vmatpush1.bf16.xpose.msra.mxu0 0
    %428 = vmatprep.subr.bf16.mxu0 0
    %429 = vmatpush1.bf16.xpose.msra.mxu0 0
    %430 = vmatprep.subr.bf16.mxu0 0
    %431 = vmatpush1.bf16.xpose.msra.mxu0 0
    %432 = vmatprep.subr.bf16.mxu0 0
    %433 = vmatpush1.bf16.xpose.msra.mxu0 0
    %434 = vmatprep.subr.bf16.mxu0 0
    %435 = vmatpush1.bf16.xpose.msra.mxu0 0
    %436 = vmatprep.subr.bf16.mxu0 0
    %437 = vmatpush1.bf16.xpose.msra.mxu0 %v419
    %438 = vmatprep.subr.bf16.mxu0 0
    %439 = vmatpush2.bf16.xpose.msra.mxu0 0
    %440 = vmatprep.subr.bf16.mxu0 0
    %441 = vmatpush2.bf16.xpose.msra.mxu0 0
    %442 = vmatprep.subr.bf16.mxu0 0
    %443 = vmatpush2.bf16.xpose.msra.mxu0 0
    %444 = vmatprep.subr.bf16.mxu0 0
    %445 = vmatpush2.bf16.xpose.msra.mxu0 0
    %446 = vmatprep.subr.bf16.mxu0 0
    %447 = vmatpush2.bf16.xpose.msra.mxu0 0
    %448 = vmatprep.subr.bf16.mxu0 0
    %449 = vmatpush2.bf16.xpose.msra.mxu0 0
    %450 = vmatprep.subr.bf16.mxu0 0
    %451 = vmatpush2.bf16.xpose.msra.mxu0 0
    %452 = vmatprep.subr.bf16.mxu0 0
    %453 = vmatpush2.bf16.xpose.msra.mxu0 0
    %454 = vmatprep.mubr.bf16.mxu0 0
    %455 = vmatmul.mubr.bf16.gmra.mxu0 %v421
    %v456 = vpop.f32.mrf.mxu0
    %v457 = vadd.f32 0.0, %v456
    %v458 = vpop.f32.mrf.mxu0
    %v459 = vpop.f32.mrf.mxu0
    %v460 = vpop.f32.mrf.mxu0
    %461 = vdwg.mxu0
    %vm462 = vcmask 31744
    %v463 = vsel %vm462, %v457, -inf
    %464 = vmax.xlane.f32.xlu0 %v463
    %v465 = vpop.xlane.xlu0 %464
    %v466 = vsub.f32 %v457, %v465
    %v467 = vmul.f32 %v466, 1.442695
    %v468 = vpow.pop %v467
    %v469 = vsel %vm462, %v468, 0.0
    %470 = vadd.xlane.f32.xlu0 %v469
    %v471 = vpop.xlane.xlu0 %470
    %v472 = vrcp.pop %v471
    %v473 = vmul.f32 %v468, %v472
    %v474 = vpack.c.bf16 %v473, %v473
    %v476 = vsel %vm462, %v474, 0
    %vm478 = vcmask 1041408
    %v480 = vsel %vm478, %v420, 0
    %482 = vmatprep.subr.bf16.mxu0 0
    %483 = vmatpush1.bf16.msra.mxu0 0
    %484 = vmatprep.subr.bf16.mxu0 0
    %485 = vmatpush1.bf16.msra.mxu0 0
    %486 = vmatprep.subr.bf16.mxu0 0
    %487 = vmatpush1.bf16.msra.mxu0 0
    %488 = vmatprep.subr.bf16.mxu0 0
    %489 = vmatpush1.bf16.msra.mxu0 0
    %490 = vmatprep.subr.bf16.mxu0 0
    %491 = vmatpush1.bf16.msra.mxu0 0
    %492 = vmatprep.subr.bf16.mxu0 0
    %493 = vmatpush1.bf16.msra.mxu0 0
    %494 = vmatprep.subr.bf16.mxu0 0
    %495 = vmatpush1.bf16.msra.mxu0 0
    %496 = vmatprep.subr.bf16.mxu0 0
    %497 = vmatpush1.bf16.msra.mxu0 %v480
    %498 = vmatprep.subr.bf16.mxu0 0
    %499 = vmatpush2.bf16.msra.mxu0 0
    %500 = vmatprep.subr.bf16.mxu0 0
    %501 = vmatpush2.bf16.msra.mxu0 0
    %502 = vmatprep.subr.bf16.mxu0 0
    %503 = vmatpush2.bf16.msra.mxu0 0
    %504 = vmatprep.subr.bf16.mxu0 0
    %505 = vmatpush2.bf16.msra.mxu0 0
    %506 = vmatprep.subr.bf16.mxu0 0
    %507 = vmatpush2.bf16.msra.mxu0 0
    %508 = vmatprep.subr.bf16.mxu0 0
    %509 = vmatpush2.bf16.msra.mxu0 0
    %510 = vmatprep.subr.bf16.mxu0 0
    %511 = vmatpush2.bf16.msra.mxu0 0
    %512 = vmatprep.subr.bf16.mxu0 0
    %513 = vmatpush2.bf16.msra.mxu0 0
    %514 = vmatprep.mubr.bf16.mxu0 0
    %515 = vmatmul.mubr.bf16.gmra.mxu0 %v476
    %v516 = vpop.f32.mrf.mxu0
    %v517 = vadd.f32 0.0, %v516
    %v518 = vpop.f32.mrf.mxu0
    %v519 = vpop.f32.mrf.mxu0
    %v520 = vpop.f32.mrf.mxu0
    %521 = vdwg.mxu0
    %v522 = vpack.c.bf16 %v517, %v517
    %v523 = vld [vmem:[%s8] sm:$0xf]
    %v524 = vld [vmem:[%s8 + $0x4] sm:$0xf]
    %v525 = vld [vmem:[%s8 + $0x8] sm:$0xf]
    %v526 = vld [vmem:[%s8 + $0xc] sm:$0xf]
    %v527 = vld [vmem:[%s8 + $0x10] sm:$0xf]
    %v528 = vld [vmem:[%s8 + $0x14] sm:$0xf]
    %v529 = vld [vmem:[%s8 + $0x18] sm:$0xf]
    %v530 = vld [vmem:[%s8 + $0x1c] sm:$0xf]
    %v531 = vld [vmem:[%s8 + $0x20] sm:$0xf]
    %v532 = vld [vmem:[%s8 + $0x24] sm:$0xf]
    %v533 = vld [vmem:[%s8 + $0x28] sm:$0xf]
    %v534 = vld [vmem:[%s8 + $0x2c] sm:$0xf]
    %v535 = vld [vmem:[%s8 + $0x30] sm:$0xf]
    %v536 = vld [vmem:[%s8 + $0x34] sm:$0xf]
    %v537 = vld [vmem:[%s8 + $0x38] sm:$0xf]
    %v538 = vld [vmem:[%s8 + $0x3c] sm:$0xf]
    %v555 = vunpack.c.l.b16 %v523
    %v556 = vunpack.c.l.b16 %v524
    %v557 = vunpack.c.l.b16 %v525
    %v558 = vunpack.c.l.b16 %v526
    %v559 = vunpack.c.l.b16 %v527
    %v560 = vunpack.c.l.b16 %v528
    %v561 = vunpack.c.l.b16 %v529
    %v562 = vunpack.c.l.b16 %v530
    %v563 = vunpack.c.l.b16 %v531
    %v564 = vunpack.c.l.b16 %v532
    %v565 = vunpack.c.l.b16 %v533
    %v566 = vunpack.c.l.b16 %v534
    %v567 = vunpack.c.l.b16 %v535
    %v568 = vunpack.c.l.b16 %v536
    %v569 = vunpack.c.l.b16 %v537
    %v570 = vunpack.c.l.b16 %v538
    %v571 = vpack.c.b16 %v556, %v555
    %v572 = vpack.c.b16 %v558, %v557
    %v573 = vpack.c.b16 %v560, %v559
    %v574 = vpack.c.b16 %v562, %v561
    %v575 = vpack.c.b16 %v564, %v563
    %v576 = vpack.c.b16 %v566, %v565
    %v577 = vpack.c.b16 %v568, %v567
    %v578 = vpack.c.b16 %v570, %v569
    %587 = vmatprep.subr.bf16.mxu0 0
    %588 = vmatpush1.bf16.msra.mxu0 %v578
    %589 = vmatprep.subr.bf16.mxu0 0
    %590 = vmatpush1.bf16.msra.mxu0 %v577
    %591 = vmatprep.subr.bf16.mxu0 0
    %592 = vmatpush1.bf16.msra.mxu0 %v576
    %593 = vmatprep.subr.bf16.mxu0 0
    %594 = vmatpush1.bf16.msra.mxu0 %v575
    %595 = vmatprep.subr.bf16.mxu0 0
    %596 = vmatpush1.bf16.msra.mxu0 %v574
    %597 = vmatprep.subr.bf16.mxu0 0
    %598 = vmatpush1.bf16.msra.mxu0 %v573
    %599 = vmatprep.subr.bf16.mxu0 0
    %600 = vmatpush1.bf16.msra.mxu0 %v572
    %601 = vmatprep.subr.bf16.mxu0 0
    %602 = vmatpush1.bf16.msra.mxu0 %v571
    %603 = vmatprep.subr.bf16.mxu0 0
    %604 = vmatpush2.bf16.msra.mxu0 0
    %605 = vmatprep.subr.bf16.mxu0 0
    %606 = vmatpush2.bf16.msra.mxu0 0
    %607 = vmatprep.subr.bf16.mxu0 0
    %608 = vmatpush2.bf16.msra.mxu0 0
    %609 = vmatprep.subr.bf16.mxu0 0
    %610 = vmatpush2.bf16.msra.mxu0 0
    %611 = vmatprep.subr.bf16.mxu0 0
    %612 = vmatpush2.bf16.msra.mxu0 0
    %613 = vmatprep.subr.bf16.mxu0 0
    %614 = vmatpush2.bf16.msra.mxu0 0
    %615 = vmatprep.subr.bf16.mxu0 0
    %616 = vmatpush2.bf16.msra.mxu0 0
    %617 = vmatprep.subr.bf16.mxu0 0
    %618 = vmatpush2.bf16.msra.mxu0 0
    %619 = vmatprep.mubr.bf16.mxu0 0
    %620 = vmatmul.mubr.bf16.gmra.mxu0 %v522
    %v621 = vpop.f32.mrf.mxu0
    %v622 = vadd.f32 0.0, %v621
    %v623 = vpop.f32.mrf.mxu0
    %v624 = vpop.f32.mrf.mxu0
    %v625 = vpop.f32.mrf.mxu0
    %626 = vdwg.mxu0
    %627 = vst [vmem:[#allocation2] sm:$0xff] %v622
    %v628 = vld [vmem:[%s2] sm:$0xf]
    %v629 = vunpack.c.l.bf16 %v628
    %630 = vst [vmem:[#allocation2 + $0x8] sm:$0xff] %v629
    %s631 = scalar_lea.vmem %s0, 4
    %v632 = vld [vmem:[%s631] sm:$0xf]
    %v633 = vld [vmem:[%s5] sm:$0xff]
    %v634 = vld [vmem:[%s5 + $0x8] sm:$0xff]
    %v635 = vld [vmem:[%s5 + $0x10] sm:$0xff]
    %v636 = vld [vmem:[%s5 + $0x18] sm:$0xff]
    %v637 = vld [vmem:[%s5 + $0x20] sm:$0xff]
    %v638 = vld [vmem:[%s5 + $0x28] sm:$0xff]
    %v639 = vld [vmem:[%s5 + $0x30] sm:$0xff]
    %v640 = vld [vmem:[%s5 + $0x38] sm:$0xff]
    %v641 = vld [vmem:[%s5 + $0x40] sm:$0xff]
    %v642 = vld [vmem:[%s5 + $0x48] sm:$0xff]
    %v643 = vld [vmem:[%s5 + $0x50] sm:$0xff]
    %v644 = vld [vmem:[%s5 + $0x58] sm:$0xff]
    %v645 = vld [vmem:[%s5 + $0x60] sm:$0xff]
    %v646 = vld [vmem:[%s5 + $0x68] sm:$0xff]
    %v647 = vld [vmem:[%s5 + $0x70] sm:$0xff]
    %v648 = vld [vmem:[%s5 + $0x78] sm:$0xff]
    %v649 = vld [vmem:[%s5 + $0x80] sm:$0xff]
    %v650 = vld [vmem:[%s5 + $0x88] sm:$0xff]
    %v651 = vld [vmem:[%s5 + $0x90] sm:$0xff]
    %v652 = vld [vmem:[%s5 + $0x98] sm:$0xff]
    %v653 = vld [vmem:[%s5 + $0xa0] sm:$0xff]
    %v654 = vld [vmem:[%s5 + $0xa8] sm:$0xff]
    %v655 = vld [vmem:[%s5 + $0xb0] sm:$0xff]
    %v656 = vld [vmem:[%s5 + $0xb8] sm:$0xff]
    %v657 = vld [vmem:[%s5 + $0xc0] sm:$0xff]
    %v658 = vld [vmem:[%s5 + $0xc8] sm:$0xff]
    %v659 = vld [vmem:[%s5 + $0xd0] sm:$0xff]
    %v660 = vld [vmem:[%s5 + $0xd8] sm:$0xff]
    %v661 = vld [vmem:[%s5 + $0xe0] sm:$0xff]
    %v662 = vld [vmem:[%s5 + $0xe8] sm:$0xff]
    %v663 = vld [vmem:[%s5 + $0xf0] sm:$0xff]
    %v664 = vld [vmem:[%s5 + $0xf8] sm:$0xff]
    %v665 = vld [vmem:[%s6] sm:$0x3]
    %v667 = vlaneseq
    %v668 = vshrl.u32 %v667, 7
    %v669 = vsub.s32 0, %v668
    %v670 = vrot.slane %v665, %v669
    %v671 = vlaneseq
    %v672 = vshrl.u32 %v671, 7
    %v673 = vsub.s32 1, %v672
    %v674 = vrot.slane %v665, %v673
    %v679 = vunpack.c.l.s4 1983009808
    %v680 = vunpack.c.0.s8 %v679
    %v681 = vlaneseq
    %v682 = vshrl.u32 %v681, 7
    %v683 = vsub.s32 %v680, %v682
    %v684 = vrot.slane %v632, %v683
    %v685 = vcombine.high %v684, %v684
    %v720 = vunpack.c.l.b16 %v633
    %v721 = vunpack.c.h.b16 %v633
    %v722 = vunpack.c.l.b16 %v634
    %v723 = vunpack.c.h.b16 %v634
    %v724 = vunpack.c.l.b16 %v635
    %v725 = vunpack.c.h.b16 %v635
    %v726 = vunpack.c.l.b16 %v636
    %v727 = vunpack.c.h.b16 %v636
    %v728 = vunpack.c.l.b16 %v637
    %v729 = vunpack.c.h.b16 %v637
    %v730 = vunpack.c.l.b16 %v638
    %v731 = vunpack.c.h.b16 %v638
    %v732 = vunpack.c.l.b16 %v639
    %v733 = vunpack.c.h.b16 %v639
    %v734 = vunpack.c.l.b16 %v640
    %v735 = vunpack.c.h.b16 %v640
    %v736 = vunpack.c.l.b16 %v641
    %v737 = vunpack.c.h.b16 %v641
    %v738 = vunpack.c.l.b16 %v642
    %v739 = vunpack.c.h.b16 %v642
    %v740 = vunpack.c.l.b16 %v643
    %v741 = vunpack.c.h.b16 %v643
    %v742 = vunpack.c.l.b16 %v644
    %v743 = vunpack.c.h.b16 %v644
    %v744 = vunpack.c.l.b16 %v645
    %v745 = vunpack.c.h.b16 %v645
    %v746 = vunpack.c.l.b16 %v646
    %v747 = vunpack.c.h.b16 %v646
    %v748 = vunpack.c.l.b16 %v647
    %v749 = vunpack.c.h.b16 %v647
    %v750 = vunpack.c.l.b16 %v648
    %v751 = vunpack.c.h.b16 %v648
    %v752 = vunpack.c.l.b16 %v649
    %v753 = vunpack.c.h.b16 %v649
    %v754 = vunpack.c.l.b16 %v650
    %v755 = vunpack.c.h.b16 %v650
    %v756 = vunpack.c.l.b16 %v651
    %v757 = vunpack.c.h.b16 %v651
    %v758 = vunpack.c.l.b16 %v652
    %v759 = vunpack.c.h.b16 %v652
    %v760 = vunpack.c.l.b16 %v653
    %v761 = vunpack.c.h.b16 %v653
    %v762 = vunpack.c.l.b16 %v654
    %v763 = vunpack.c.h.b16 %v654
    %v764 = vunpack.c.l.b16 %v655
    %v765 = vunpack.c.h.b16 %v655
    %v766 = vunpack.c.l.b16 %v656
    %v767 = vunpack.c.h.b16 %v656
    %v768 = vunpack.c.l.b16 %v657
    %v769 = vunpack.c.h.b16 %v657
    %v770 = vunpack.c.l.b16 %v658
    %v771 = vunpack.c.h.b16 %v658
    %v772 = vunpack.c.l.b16 %v659
    %v773 = vunpack.c.h.b16 %v659
    %v774 = vunpack.c.l.b16 %v660
    %v775 = vunpack.c.h.b16 %v660
    %v776 = vunpack.c.l.b16 %v661
    %v777 = vunpack.c.h.b16 %v661
    %v778 = vunpack.c.l.b16 %v662
    %v779 = vunpack.c.h.b16 %v662
    %v780 = vunpack.c.l.b16 %v663
    %v781 = vunpack.c.h.b16 %v663
    %v782 = vunpack.c.l.b16 %v664
    %v783 = vunpack.c.h.b16 %v664
    %v784 = vpack.c.b16 %v722, %v720
    %v785 = vpack.c.b16 %v723, %v721
    %v786 = vpack.c.b16 %v726, %v724
    %v787 = vpack.c.b16 %v727, %v725
    %v788 = vpack.c.b16 %v730, %v728
    %v789 = vpack.c.b16 %v731, %v729
    %v790 = vpack.c.b16 %v734, %v732
    %v791 = vpack.c.b16 %v735, %v733
    %v792 = vpack.c.b16 %v738, %v736
    %v793 = vpack.c.b16 %v739, %v737
    %v794 = vpack.c.b16 %v742, %v740
    %v795 = vpack.c.b16 %v743, %v741
    %v796 = vpack.c.b16 %v746, %v744
    %v797 = vpack.c.b16 %v747, %v745
    %v798 = vpack.c.b16 %v750, %v748
    %v799 = vpack.c.b16 %v751, %v749
    %v800 = vpack.c.b16 %v754, %v752
    %v801 = vpack.c.b16 %v755, %v753
    %v802 = vpack.c.b16 %v758, %v756
    %v803 = vpack.c.b16 %v759, %v757
    %v804 = vpack.c.b16 %v762, %v760
    %v805 = vpack.c.b16 %v763, %v761
    %v806 = vpack.c.b16 %v766, %v764
    %v807 = vpack.c.b16 %v767, %v765
    %v808 = vpack.c.b16 %v770, %v768
    %v809 = vpack.c.b16 %v771, %v769
    %v810 = vpack.c.b16 %v774, %v772
    %v811 = vpack.c.b16 %v775, %v773
    %v812 = vpack.c.b16 %v778, %v776
    %v813 = vpack.c.b16 %v779, %v777
    %v814 = vpack.c.b16 %v782, %v780
    %v815 = vpack.c.b16 %v783, %v781
    %848 = vmatprep.subr.bf16.mxu0 %v799
    %849 = vmatpush1.bf16.msra.mxu0 %v798
    %850 = vmatprep.subr.bf16.mxu0 %v797
    %851 = vmatpush1.bf16.msra.mxu0 %v796
    %852 = vmatprep.subr.bf16.mxu0 %v795
    %853 = vmatpush1.bf16.msra.mxu0 %v794
    %854 = vmatprep.subr.bf16.mxu0 %v793
    %855 = vmatpush1.bf16.msra.mxu0 %v792
    %856 = vmatprep.subr.bf16.mxu0 %v791
    %857 = vmatpush1.bf16.msra.mxu0 %v790
    %858 = vmatprep.subr.bf16.mxu0 %v789
    %859 = vmatpush1.bf16.msra.mxu0 %v788
    %860 = vmatprep.subr.bf16.mxu0 %v787
    %861 = vmatpush1.bf16.msra.mxu0 %v786
    %862 = vmatprep.subr.bf16.mxu0 %v785
    %863 = vmatpush1.bf16.msra.mxu0 %v784
    %864 = vmatprep.subr.bf16.mxu0 %v815
    %865 = vmatpush2.bf16.msra.mxu0 %v814
    %866 = vmatprep.subr.bf16.mxu0 %v813
    %867 = vmatpush2.bf16.msra.mxu0 %v812
    %868 = vmatprep.subr.bf16.mxu0 %v811
    %869 = vmatpush2.bf16.msra.mxu0 %v810
    %870 = vmatprep.subr.bf16.mxu0 %v809
    %871 = vmatpush2.bf16.msra.mxu0 %v808
    %872 = vmatprep.subr.bf16.mxu0 %v807
    %873 = vmatpush2.bf16.msra.mxu0 %v806
    %874 = vmatprep.subr.bf16.mxu0 %v805
    %875 = vmatpush2.bf16.msra.mxu0 %v804
    %876 = vmatprep.subr.bf16.mxu0 %v803
    %877 = vmatpush2.bf16.msra.mxu0 %v802
    %878 = vmatprep.subr.bf16.mxu0 %v801
    %879 = vmatpush2.bf16.msra.mxu0 %v800
    %880 = vmatprep.mubr.bf16.mxu0 %v685
    %881 = vmatmul.mubr.bf16.gmra.mxu0 %v684
    %v882 = vpop.f32.mrf.mxu0
    %v883 = vadd.f32 %v670, %v882
    %v884 = vpop.f32.mrf.mxu0
    %v885 = vadd.f32 %v674, %v884
    %v886 = vpop.f32.mrf.mxu0
    %v887 = vpop.f32.mrf.mxu0
    %888 = vdwg.mxu0
    %v889 = vpack.c.bf16 %v883, %v883
    %v890 = vpack.c.bf16 %v885, %v885
    %v891 = vpack.c.bf16 %v159, %v159
    %892 = vmatprep.subr.bf16.mxu0 0
    %893 = vmatpush1.bf16.xpose.msra.mxu0 0
    %894 = vmatprep.subr.bf16.mxu0 0
    %895 = vmatpush1.bf16.xpose.msra.mxu0 0
    %896 = vmatprep.subr.bf16.mxu0 0
    %897 = vmatpush1.bf16.xpose.msra.mxu0 0
    %898 = vmatprep.subr.bf16.mxu0 0
    %899 = vmatpush1.bf16.xpose.msra.mxu0 0
    %900 = vmatprep.subr.bf16.mxu0 0
    %901 = vmatpush1.bf16.xpose.msra.mxu0 0
    %902 = vmatprep.subr.bf16.mxu0 0
    %903 = vmatpush1.bf16.xpose.msra.mxu0 0
    %904 = vmatprep.subr.bf16.mxu0 0
    %905 = vmatpush1.bf16.xpose.msra.mxu0 0
    %906 = vmatprep.subr.bf16.mxu0 0
    %907 = vmatpush1.bf16.xpose.msra.mxu0 %v889
    %908 = vmatprep.subr.bf16.mxu0 0
    %909 = vmatpush2.bf16.xpose.msra.mxu0 0
    %910 = vmatprep.subr.bf16.mxu0 0
    %911 = vmatpush2.bf16.xpose.msra.mxu0 0
    %912 = vmatprep.subr.bf16.mxu0 0
    %913 = vmatpush2.bf16.xpose.msra.mxu0 0
    %914 = vmatprep.subr.bf16.mxu0 0
    %915 = vmatpush2.bf16.xpose.msra.mxu0 0
    %916 = vmatprep.subr.bf16.mxu0 0
    %917 = vmatpush2.bf16.xpose.msra.mxu0 0
    %918 = vmatprep.subr.bf16.mxu0 0
    %919 = vmatpush2.bf16.xpose.msra.mxu0 0
    %920 = vmatprep.subr.bf16.mxu0 0
    %921 = vmatpush2.bf16.xpose.msra.mxu0 0
    %922 = vmatprep.subr.bf16.mxu0 0
    %923 = vmatpush2.bf16.xpose.msra.mxu0 0
    %924 = vmatprep.mubr.bf16.mxu0 0
    %925 = vmatmul.mubr.bf16.gmra.mxu0 %v891
    %v926 = vpop.f32.mrf.mxu0
    %v927 = vadd.f32 0.0, %v926
    %v928 = vpop.f32.mrf.mxu0
    %v929 = vpop.f32.mrf.mxu0
    %v930 = vpop.f32.mrf.mxu0
    %931 = vdwg.mxu0
    %v932 = vsel %vm462, %v927, -inf
    %933 = vmax.xlane.f32.xlu0 %v932
    %v934 = vpop.xlane.xlu0 %933
    %v935 = vsub.f32 %v927, %v934
    %v936 = vmul.f32 %v935, 1.442695
    %v937 = vpow.pop %v936
    %v938 = vsel %vm462, %v937, 0.0
    %939 = vadd.xlane.f32.xlu0 %v938
    %v940 = vpop.xlane.xlu0 %939
    %v941 = vrcp.pop %v940
    %v942 = vmul.f32 %v937, %v941
    %v943 = vpack.c.bf16 %v942, %v942
    %v945 = vsel %vm462, %v943, 0
    %v948 = vsel %vm478, %v890, 0
    %950 = vmatprep.subr.bf16.mxu0 0
    %951 = vmatpush1.bf16.msra.mxu0 0
    %952 = vmatprep.subr.bf16.mxu0 0
    %953 = vmatpush1.bf16.msra.mxu0 0
    %954 = vmatprep.subr.bf16.mxu0 0
    %955 = vmatpush1.bf16.msra.mxu0 0
    %956 = vmatprep.subr.bf16.mxu0 0
    %957 = vmatpush1.bf16.msra.mxu0 0
    %958 = vmatprep.subr.bf16.mxu0 0
    %959 = vmatpush1.bf16.msra.mxu0 0
    %960 = vmatprep.subr.bf16.mxu0 0
    %961 = vmatpush1.bf16.msra.mxu0 0
    %962 = vmatprep.subr.bf16.mxu0 0
    %963 = vmatpush1.bf16.msra.mxu0 0
    %964 = vmatprep.subr.bf16.mxu0 0
    %965 = vmatpush1.bf16.msra.mxu0 %v948
    %966 = vmatprep.subr.bf16.mxu0 0
    %967 = vmatpush2.bf16.msra.mxu0 0
    %968 = vmatprep.subr.bf16.mxu0 0
    %969 = vmatpush2.bf16.msra.mxu0 0
    %970 = vmatprep.subr.bf16.mxu0 0
    %971 = vmatpush2.bf16.msra.mxu0 0
    %972 = vmatprep.subr.bf16.mxu0 0
    %973 = vmatpush2.bf16.msra.mxu0 0
    %974 = vmatprep.subr.bf16.mxu0 0
    %975 = vmatpush2.bf16.msra.mxu0 0
    %976 = vmatprep.subr.bf16.mxu0 0
    %977 = vmatpush2.bf16.msra.mxu0 0
    %978 = vmatprep.subr.bf16.mxu0 0
    %979 = vmatpush2.bf16.msra.mxu0 0
    %980 = vmatprep.subr.bf16.mxu0 0
    %981 = vmatpush2.bf16.msra.mxu0 0
    %982 = vmatprep.mubr.bf16.mxu0 0
    %983 = vmatmul.mubr.bf16.gmra.mxu0 %v945
    %v984 = vpop.f32.mrf.mxu0
    %v985 = vadd.f32 0.0, %v984
    %v986 = vpop.f32.mrf.mxu0
    %v987 = vpop.f32.mrf.mxu0
    %v988 = vpop.f32.mrf.mxu0
    %989 = vdwg.mxu0
    %v990 = vpack.c.bf16 %v985, %v985
    %v991 = vld [vmem:[%s8] sm:$0xf]
    %v992 = vld [vmem:[%s8 + $0x4] sm:$0xf]
    %v993 = vld [vmem:[%s8 + $0x8] sm:$0xf]
    %v994 = vld [vmem:[%s8 + $0xc] sm:$0xf]
    %v995 = vld [vmem:[%s8 + $0x10] sm:$0xf]
    %v996 = vld [vmem:[%s8 + $0x14] sm:$0xf]
    %v997 = vld [vmem:[%s8 + $0x18] sm:$0xf]
    %v998 = vld [vmem:[%s8 + $0x1c] sm:$0xf]
    %v999 = vld [vmem:[%s8 + $0x20] sm:$0xf]
    %v1000 = vld [vmem:[%s8 + $0x24] sm:$0xf]
    %v1001 = vld [vmem:[%s8 + $0x28] sm:$0xf]
    %v1002 = vld [vmem:[%s8 + $0x2c] sm:$0xf]
    %v1003 = vld [vmem:[%s8 + $0x30] sm:$0xf]
    %v1004 = vld [vmem:[%s8 + $0x34] sm:$0xf]
    %v1005 = vld [vmem:[%s8 + $0x38] sm:$0xf]
    %v1006 = vld [vmem:[%s8 + $0x3c] sm:$0xf]
    %v1023 = vunpack.c.l.b16 %v991
    %v1024 = vunpack.c.l.b16 %v992
    %v1025 = vunpack.c.l.b16 %v993
    %v1026 = vunpack.c.l.b16 %v994
    %v1027 = vunpack.c.l.b16 %v995
    %v1028 = vunpack.c.l.b16 %v996
    %v1029 = vunpack.c.l.b16 %v997
    %v1030 = vunpack.c.l.b16 %v998
    %v1031 = vunpack.c.l.b16 %v999
    %v1032 = vunpack.c.l.b16 %v1000
    %v1033 = vunpack.c.l.b16 %v1001
    %v1034 = vunpack.c.l.b16 %v1002
    %v1035 = vunpack.c.l.b16 %v1003
    %v1036 = vunpack.c.l.b16 %v1004
    %v1037 = vunpack.c.l.b16 %v1005
    %v1038 = vunpack.c.l.b16 %v1006
    %v1039 = vpack.c.b16 %v1024, %v1023
    %v1040 = vpack.c.b16 %v1026, %v1025
    %v1041 = vpack.c.b16 %v1028, %v1027
    %v1042 = vpack.c.b16 %v1030, %v1029
    %v1043 = vpack.c.b16 %v1032, %v1031
    %v1044 = vpack.c.b16 %v1034, %v1033
    %v1045 = vpack.c.b16 %v1036, %v1035
    %v1046 = vpack.c.b16 %v1038, %v1037
    %1055 = vmatprep.subr.bf16.mxu0 0
    %1056 = vmatpush1.bf16.msra.mxu0 %v1046
    %1057 = vmatprep.subr.bf16.mxu0 0
    %1058 = vmatpush1.bf16.msra.mxu0 %v1045
    %1059 = vmatprep.subr.bf16.mxu0 0
    %1060 = vmatpush1.bf16.msra.mxu0 %v1044
    %1061 = vmatprep.subr.bf16.mxu0 0
    %1062 = vmatpush1.bf16.msra.mxu0 %v1043
    %1063 = vmatprep.subr.bf16.mxu0 0
    %1064 = vmatpush1.bf16.msra.mxu0 %v1042
    %1065 = vmatprep.subr.bf16.mxu0 0
    %1066 = vmatpush1.bf16.msra.mxu0 %v1041
    %1067 = vmatprep.subr.bf16.mxu0 0
    %1068 = vmatpush1.bf16.msra.mxu0 %v1040
    %1069 = vmatprep.subr.bf16.mxu0 0
    %1070 = vmatpush1.bf16.msra.mxu0 %v1039
    %1071 = vmatprep.subr.bf16.mxu0 0
    %1072 = vmatpush2.bf16.msra.mxu0 0
    %1073 = vmatprep.subr.bf16.mxu0 0
    %1074 = vmatpush2.bf16.msra.mxu0 0
    %1075 = vmatprep.subr.bf16.mxu0 0
    %1076 = vmatpush2.bf16.msra.mxu0 0
    %1077 = vmatprep.subr.bf16.mxu0 0
    %1078 = vmatpush2.bf16.msra.mxu0 0
    %1079 = vmatprep.subr.bf16.mxu0 0
    %1080 = vmatpush2.bf16.msra.mxu0 0
    %1081 = vmatprep.subr.bf16.mxu0 0
    %1082 = vmatpush2.bf16.msra.mxu0 0
    %1083 = vmatprep.subr.bf16.mxu0 0
    %1084 = vmatpush2.bf16.msra.mxu0 0
    %1085 = vmatprep.subr.bf16.mxu0 0
    %1086 = vmatpush2.bf16.msra.mxu0 0
    %1087 = vmatprep.mubr.bf16.mxu0 0
    %1088 = vmatmul.mubr.bf16.gmra.mxu0 %v990
    %v1089 = vpop.f32.mrf.mxu0
    %v1090 = vadd.f32 0.0, %v1089
    %v1091 = vpop.f32.mrf.mxu0
    %v1092 = vpop.f32.mrf.mxu0
    %v1093 = vpop.f32.mrf.mxu0
    %1094 = vdwg.mxu0
    %1095 = vst [vmem:[#allocation2 + $0x10] sm:$0xff] %v1090
    %v1096 = vld [vmem:[%s2 + $0x4] sm:$0xf]
    %v1097 = vunpack.c.l.bf16 %v1096
    %1098 = vst [vmem:[#allocation2 + $0x18] sm:$0xff] %v1097
    %v1099 = vld [vmem:[#allocation2] sm:$0xff]
    %v1100 = vld [vmem:[#allocation2 + $0x8] sm:$0xff]
    %v1101 = vld [vmem:[#allocation2 + $0x10] sm:$0xff]
    %v1102 = vld [vmem:[#allocation2 + $0x18] sm:$0xff]
    %v1103 = vpack.c.bf16 %v1100, %v1099
    %v1104 = vpack.c.bf16 %v1102, %v1101
    %v1105 = vld [vmem:[%s9] sm:$0xff]
    %v1106 = vld [vmem:[%s9 + $0x8] sm:$0xf]
    %v1107 = vld [vmem:[%s9 + $0xc] sm:$0xff]
    %v1108 = vld [vmem:[%s9 + $0x14] sm:$0xf]
    %v1109 = vld [vmem:[%s9 + $0x18] sm:$0xff]
    %v1110 = vld [vmem:[%s9 + $0x20] sm:$0xf]
    %v1111 = vld [vmem:[%s9 + $0x24] sm:$0xff]
    %v1112 = vld [vmem:[%s9 + $0x2c] sm:$0xf]
    %v1113 = vld [vmem:[%s9 + $0x30] sm:$0xff]
    %v1114 = vld [vmem:[%s9 + $0x38] sm:$0xf]
    %v1115 = vld [vmem:[%s9 + $0x3c] sm:$0xff]
    %v1116 = vld [vmem:[%s9 + $0x44] sm:$0xf]
    %v1117 = vld [vmem:[%s9 + $0x48] sm:$0xff]
    %v1118 = vld [vmem:[%s9 + $0x50] sm:$0xf]
    %v1119 = vld [vmem:[%s9 + $0x54] sm:$0xff]
    %v1120 = vld [vmem:[%s9 + $0x5c] sm:$0xf]
    %v1121 = vld [vmem:[%s9 + $0x60] sm:$0xff]
    %v1122 = vld [vmem:[%s9 + $0x68] sm:$0xf]
    %v1123 = vld [vmem:[%s9 + $0x6c] sm:$0xff]
    %v1124 = vld [vmem:[%s9 + $0x74] sm:$0xf]
    %v1125 = vld [vmem:[%s9 + $0x78] sm:$0xff]
    %v1126 = vld [vmem:[%s9 + $0x80] sm:$0xf]
    %v1127 = vld [vmem:[%s9 + $0x84] sm:$0xff]
    %v1128 = vld [vmem:[%s9 + $0x8c] sm:$0xf]
    %v1129 = vld [vmem:[%s9 + $0x90] sm:$0xff]
    %v1130 = vld [vmem:[%s9 + $0x98] sm:$0xf]
    %v1131 = vld [vmem:[%s9 + $0x9c] sm:$0xff]
    %v1132 = vld [vmem:[%s9 + $0xa4] sm:$0xf]
    %v1133 = vld [vmem:[%s9 + $0xa8] sm:$0xff]
    %v1134 = vld [vmem:[%s9 + $0xb0] sm:$0xf]
    %v1135 = vld [vmem:[%s9 + $0xb4] sm:$0xff]
    %v1136 = vld [vmem:[%s9 + $0xbc] sm:$0xf]
    %v1169 = vunpack.c.l.b16 %v1105
    %v1170 = vunpack.c.h.b16 %v1105
    %v1171 = vunpack.c.l.b16 %v1106
    %v1172 = vunpack.c.l.b16 %v1107
    %v1173 = vunpack.c.h.b16 %v1107
    %v1174 = vunpack.c.l.b16 %v1108
    %v1175 = vunpack.c.l.b16 %v1109
    %v1176 = vunpack.c.h.b16 %v1109
    %v1177 = vunpack.c.l.b16 %v1110
    %v1178 = vunpack.c.l.b16 %v1111
    %v1179 = vunpack.c.h.b16 %v1111
    %v1180 = vunpack.c.l.b16 %v1112
    %v1181 = vunpack.c.l.b16 %v1113
    %v1182 = vunpack.c.h.b16 %v1113
    %v1183 = vunpack.c.l.b16 %v1114
    %v1184 = vunpack.c.l.b16 %v1115
    %v1185 = vunpack.c.h.b16 %v1115
    %v1186 = vunpack.c.l.b16 %v1116
    %v1187 = vunpack.c.l.b16 %v1117
    %v1188 = vunpack.c.h.b16 %v1117
    %v1189 = vunpack.c.l.b16 %v1118
    %v1190 = vunpack.c.l.b16 %v1119
    %v1191 = vunpack.c.h.b16 %v1119
    %v1192 = vunpack.c.l.b16 %v1120
    %v1193 = vunpack.c.l.b16 %v1121
    %v1194 = vunpack.c.h.b16 %v1121
    %v1195 = vunpack.c.l.b16 %v1122
    %v1196 = vunpack.c.l.b16 %v1123
    %v1197 = vunpack.c.h.b16 %v1123
    %v1198 = vunpack.c.l.b16 %v1124
    %v1199 = vunpack.c.l.b16 %v1125
    %v1200 = vunpack.c.h.b16 %v1125
    %v1201 = vunpack.c.l.b16 %v1126
    %v1202 = vunpack.c.l.b16 %v1127
    %v1203 = vunpack.c.h.b16 %v1127
    %v1204 = vunpack.c.l.b16 %v1128
    %v1205 = vunpack.c.l.b16 %v1129
    %v1206 = vunpack.c.h.b16 %v1129
    %v1207 = vunpack.c.l.b16 %v1130
    %v1208 = vunpack.c.l.b16 %v1131
    %v1209 = vunpack.c.h.b16 %v1131
    %v1210 = vunpack.c.l.b16 %v1132
    %v1211 = vunpack.c.l.b16 %v1133
    %v1212 = vunpack.c.h.b16 %v1133
    %v1213 = vunpack.c.l.b16 %v1134
    %v1214 = vunpack.c.l.b16 %v1135
    %v1215 = vunpack.c.h.b16 %v1135
    %v1216 = vunpack.c.l.b16 %v1136
    %v1217 = vpack.c.b16 %v1172, %v1169
    %v1218 = vpack.c.b16 %v1173, %v1170
    %v1219 = vpack.c.b16 %v1174, %v1171
    %v1220 = vpack.c.b16 %v1178, %v1175
    %v1221 = vpack.c.b16 %v1179, %v1176
    %v1222 = vpack.c.b16 %v1180, %v1177
    %v1223 = vpack.c.b16 %v1184, %v1181
    %v1224 = vpack.c.b16 %v1185, %v1182
    %v1225 = vpack.c.b16 %v1186, %v1183
    %v1226 = vpack.c.b16 %v1190, %v1187
    %v1227 = vpack.c.b16 %v1191, %v1188
    %v1228 = vpack.c.b16 %v1192, %v1189
    %v1229 = vpack.c.b16 %v1196, %v1193
    %v1230 = vpack.c.b16 %v1197, %v1194
    %v1231 = vpack.c.b16 %v1198, %v1195
    %v1232 = vpack.c.b16 %v1202, %v1199
    %v1233 = vpack.c.b16 %v1203, %v1200
    %v1234 = vpack.c.b16 %v1204, %v1201
    %v1235 = vpack.c.b16 %v1208, %v1205
    %v1236 = vpack.c.b16 %v1209, %v1206
    %v1237 = vpack.c.b16 %v1210, %v1207
    %v1238 = vpack.c.b16 %v1214, %v1211
    %v1239 = vpack.c.b16 %v1215, %v1212
    %v1240 = vpack.c.b16 %v1216, %v1213
    %1265 = vmatprep.subr.bf16.mxu0 %v1239
    %1266 = vmatpush1.bf16.msra.mxu0 %v1238
    %1267 = vmatprep.subr.bf16.mxu0 %v1236
    %1268 = vmatpush1.bf16.msra.mxu0 %v1235
    %1269 = vmatprep.subr.bf16.mxu0 %v1233
    %1270 = vmatpush1.bf16.msra.mxu0 %v1232
    %1271 = vmatprep.subr.bf16.mxu0 %v1230
    %1272 = vmatpush1.bf16.msra.mxu0 %v1229
    %1273 = vmatprep.subr.bf16.mxu0 %v1227
    %1274 = vmatpush1.bf16.msra.mxu0 %v1226
    %1275 = vmatprep.subr.bf16.mxu0 %v1224
    %1276 = vmatpush1.bf16.msra.mxu0 %v1223
    %1277 = vmatprep.subr.bf16.mxu0 %v1221
    %1278 = vmatpush1.bf16.msra.mxu0 %v1220
    %1279 = vmatprep.subr.bf16.mxu0 %v1218
    %1280 = vmatpush1.bf16.msra.mxu0 %v1217
    %1281 = vmatprep.subr.bf16.mxu0 0
    %1282 = vmatpush2.bf16.msra.mxu0 0
    %1283 = vmatprep.subr.bf16.mxu0 0
    %1284 = vmatpush2.bf16.msra.mxu0 0
    %1285 = vmatprep.subr.bf16.mxu0 0
    %1286 = vmatpush2.bf16.msra.mxu0 0
    %1287 = vmatprep.subr.bf16.mxu0 0
    %1288 = vmatpush2.bf16.msra.mxu0 0
    %1289 = vmatprep.subr.bf16.mxu0 0
    %1290 = vmatpush2.bf16.msra.mxu0 0
    %1291 = vmatprep.subr.bf16.mxu0 0
    %1292 = vmatpush2.bf16.msra.mxu0 0
    %1293 = vmatprep.subr.bf16.mxu0 0
    %1294 = vmatpush2.bf16.msra.mxu0 0
    %1295 = vmatprep.subr.bf16.mxu0 0
    %1296 = vmatpush2.bf16.msra.mxu0 0
    %1297 = vmatprep.mubr.bf16.mxu0 0
    %1298 = vmatmul.mubr.bf16.gmra.mxu0 %v1103
    %v1299 = vpop.f32.mrf.mxu0
    %v1300 = vadd.f32 0.0, %v1299
    %v1301 = vpop.f32.mrf.mxu0
    %v1302 = vadd.f32 0.0, %v1301
    %v1303 = vpop.f32.mrf.mxu0
    %v1304 = vadd.f32 0.0, %v1303
    %v1305 = vpop.f32.mrf.mxu0
    %v1306 = vadd.f32 0.0, %v1305
    %1307 = vmatprep.mubr.bf16.mxu0 0
    %1308 = vmatmul.mubr.bf16.gmra.mxu0 %v1104
    %v1309 = vpop.f32.mrf.mxu0
    %v1310 = vadd.f32 0.0, %v1309
    %v1311 = vpop.f32.mrf.mxu0
    %v1312 = vadd.f32 0.0, %v1311
    %v1313 = vpop.f32.mrf.mxu0
    %v1314 = vadd.f32 0.0, %v1313
    %v1315 = vpop.f32.mrf.mxu0
    %v1316 = vadd.f32 0.0, %v1315
    %1317 = vdwg.mxu0
    %1318 = vmatprep.subr.bf16.mxu0 0
    %1319 = vmatpush1.bf16.msra.mxu0 %v1240
    %1320 = vmatprep.subr.bf16.mxu0 0
    %1321 = vmatpush1.bf16.msra.mxu0 %v1237
    %1322 = vmatprep.subr.bf16.mxu0 0
    %1323 = vmatpush1.bf16.msra.mxu0 %v1234
    %1324 = vmatprep.subr.bf16.mxu0 0
    %1325 = vmatpush1.bf16.msra.mxu0 %v1231
    %1326 = vmatprep.subr.bf16.mxu0 0
    %1327 = vmatpush1.bf16.msra.mxu0 %v1228
    %1328 = vmatprep.subr.bf16.mxu0 0
    %1329 = vmatpush1.bf16.msra.mxu0 %v1225
    %1330 = vmatprep.subr.bf16.mxu0 0
    %1331 = vmatpush1.bf16.msra.mxu0 %v1222
    %1332 = vmatprep.subr.bf16.mxu0 0
    %1333 = vmatpush1.bf16.msra.mxu0 %v1219
    %1334 = vmatprep.subr.bf16.mxu0 0
    %1335 = vmatpush2.bf16.msra.mxu0 0
    %1336 = vmatprep.subr.bf16.mxu0 0
    %1337 = vmatpush2.bf16.msra.mxu0 0
    %1338 = vmatprep.subr.bf16.mxu0 0
    %1339 = vmatpush2.bf16.msra.mxu0 0
    %1340 = vmatprep.subr.bf16.mxu0 0
    %1341 = vmatpush2.bf16.msra.mxu0 0
    %1342 = vmatprep.subr.bf16.mxu0 0
    %1343 = vmatpush2.bf16.msra.mxu0 0
    %1344 = vmatprep.subr.bf16.mxu0 0
    %1345 = vmatpush2.bf16.msra.mxu0 0
    %1346 = vmatprep.subr.bf16.mxu0 0
    %1347 = vmatpush2.bf16.msra.mxu0 0
    %1348 = vmatprep.subr.bf16.mxu0 0
    %1349 = vmatpush2.bf16.msra.mxu0 0
    %1350 = vmatprep.mubr.bf16.mxu0 0
    %1351 = vmatmul.mubr.bf16.gmra.mxu0 %v1103
    %v1352 = vpop.f32.mrf.mxu0
    %v1353 = vadd.f32 0.0, %v1352
    %v1354 = vpop.f32.mrf.mxu0
    %v1355 = vpop.f32.mrf.mxu0
    %v1356 = vadd.f32 0.0, %v1355
    %v1357 = vpop.f32.mrf.mxu0
    %1358 = vmatprep.mubr.bf16.mxu0 0
    %1359 = vmatmul.mubr.bf16.gmra.mxu0 %v1104
    %v1360 = vpop.f32.mrf.mxu0
    %v1361 = vadd.f32 0.0, %v1360
    %v1362 = vpop.f32.mrf.mxu0
    %v1363 = vpop.f32.mrf.mxu0
    %v1364 = vadd.f32 0.0, %v1363
    %v1365 = vpop.f32.mrf.mxu0
    %1366 = vdwg.mxu0
    %v1367 = vlaneseq
    %v1368 = vshrl.u32 %v1367, 7
    %v1369 = vadd.s32 %v1368, 8
    %v1370 = vlaneseq
    %v1371 = vand.u32 %v1370, 127
    %vm1372 = vcmp.ge.s32.totalorder %v1368, %v1371
    %vm1373 = vcmp.ge.s32.totalorder %v1369, %v1371
    %v1374 = vpack.c.bf16 %v1304, %v1300
    %v1375 = vpack.c.bf16 %v1306, %v1302
    %v1376 = vpack.c.bf16 %v1356, %v1353
    %1377 = vmatprep.subr.bf16.mxu0 0
    %1378 = vmatpush1.bf16.xpose.msra.mxu0 0
    %1379 = vmatprep.subr.bf16.mxu0 0
    %1380 = vmatpush1.bf16.xpose.msra.mxu0 0
    %1381 = vmatprep.subr.bf16.mxu0 0
    %1382 = vmatpush1.bf16.xpose.msra.mxu0 0
    %1383 = vmatprep.subr.bf16.mxu0 0
    %1384 = vmatpush1.bf16.xpose.msra.mxu0 0
    %1385 = vmatprep.subr.bf16.mxu0 0
    %1386 = vmatpush1.bf16.xpose.msra.mxu0 0
    %1387 = vmatprep.subr.bf16.mxu0 0
    %1388 = vmatpush1.bf16.xpose.msra.mxu0 0
    %1389 = vmatprep.subr.bf16.mxu0 0
    %1390 = vmatpush1.bf16.xpose.msra.mxu0 0
    %1391 = vmatprep.subr.bf16.mxu0 0
    %1392 = vmatpush1.bf16.xpose.msra.mxu0 %v1375
    %1393 = vmatprep.subr.bf16.mxu0 0
    %1394 = vmatpush2.bf16.xpose.msra.mxu0 0
    %1395 = vmatprep.subr.bf16.mxu0 0
    %1396 = vmatpush2.bf16.xpose.msra.mxu0 0
    %1397 = vmatprep.subr.bf16.mxu0 0
    %1398 = vmatpush2.bf16.xpose.msra.mxu0 0
    %1399 = vmatprep.subr.bf16.mxu0 0
    %1400 = vmatpush2.bf16.xpose.msra.mxu0 0
    %1401 = vmatprep.subr.bf16.mxu0 0
    %1402 = vmatpush2.bf16.xpose.msra.mxu0 0
    %1403 = vmatprep.subr.bf16.mxu0 0
    %1404 = vmatpush2.bf16.xpose.msra.mxu0 0
    %1405 = vmatprep.subr.bf16.mxu0 0
    %1406 = vmatpush2.bf16.xpose.msra.mxu0 0
    %1407 = vmatprep.subr.bf16.mxu0 0
    %1408 = vmatpush2.bf16.xpose.msra.mxu0 0
    %1409 = vmatprep.mubr.bf16.mxu0 0
    %1410 = vmatmul.mubr.bf16.gmra.mxu0 %v1374
    %v1411 = vpop.f32.mrf.mxu0
    %v1412 = vadd.f32 0.0, %v1411
    %v1413 = vpop.f32.mrf.mxu0
    %v1414 = vpop.f32.mrf.mxu0
    %v1415 = vadd.f32 0.0, %v1414
    %v1416 = vpop.f32.mrf.mxu0
    %1417 = vdwg.mxu0
    %v1418 = vld [vmem:[%s3] sm:$0x1]
    %vm1419 = vcmp.gt.s32.totalorder %v1418, 0
    %v1420 = vsel %vm1419, 1, 0
    %v1421 = vlaneseq
    %v1422 = vshrl.u32 %v1421, 7
    %v1423 = vsub.s32 0, %v1422
    %v1424 = vrot.slane %v1420, %v1423
    %vm1425 = vcmp.eq.s32.totalorder %v1424, 1
    %vm1426 = vmand %vm1372, %vm1425
    %vm1427 = vmand %vm1373, %vm1425
    %v1428 = vsel %vm1426, %v1412, -1e+30
    %v1429 = vsel %vm1427, %v1415, -1e+30
    %vm1430 = vcmask 130048
    %v1431 = vsel %vm1430, %v1428, -inf
    %1432 = vmax.xlane.f32.xlu0 %v1431
    %v1433 = vpop.xlane.xlu0 %1432
    %v1434 = vsel %vm1430, %v1429, -inf
    %1435 = vmax.xlane.f32.xlu0 %v1434
    %v1436 = vpop.xlane.xlu0 %1435
    %v1437 = vsub.f32 %v1428, %v1433
    %v1438 = vsub.f32 %v1429, %v1436
    %v1439 = vmul.f32 %v1437, 1.442695
    %v1440 = vpow.pop %v1439
    %v1441 = vmul.f32 %v1438, 1.442695
    %v1442 = vpow.pop %v1441
    %v1443 = vsel %vm1430, %v1440, 0.0
    %1444 = vadd.xlane.f32.xlu0 %v1443
    %v1445 = vpop.xlane.xlu0 %1444
    %v1446 = vsel %vm1430, %v1442, 0.0
    %1447 = vadd.xlane.f32.xlu0 %v1446
    %v1448 = vpop.xlane.xlu0 %1447
    %v1449 = vrcp.pop %v1445
    %v1450 = vrcp.pop %v1448
    %v1451 = vmul.f32 %v1440, %v1449
    %v1452 = vmul.f32 %v1442, %v1450
    %v1453 = vpack.c.bf16 %v1452, %v1451
    %v1455 = vsel %vm1430, %v1453, 0
    %1457 = vmatprep.subr.bf16.mxu0 0
    %1458 = vmatpush1.bf16.msra.mxu0 0
    %1459 = vmatprep.subr.bf16.mxu0 0
    %1460 = vmatpush1.bf16.msra.mxu0 0
    %1461 = vmatprep.subr.bf16.mxu0 0
    %1462 = vmatpush1.bf16.msra.mxu0 0
    %1463 = vmatprep.subr.bf16.mxu0 0
    %1464 = vmatpush1.bf16.msra.mxu0 0
    %1465 = vmatprep.subr.bf16.mxu0 0
    %1466 = vmatpush1.bf16.msra.mxu0 0
    %1467 = vmatprep.subr.bf16.mxu0 0
    %1468 = vmatpush1.bf16.msra.mxu0 0
    %1469 = vmatprep.subr.bf16.mxu0 0
    %1470 = vmatpush1.bf16.msra.mxu0 0
    %1471 = vmatprep.subr.bf16.mxu0 0
    %1472 = vmatpush1.bf16.msra.mxu0 %v1376
    %1473 = vmatprep.subr.bf16.mxu0 0
    %1474 = vmatpush2.bf16.msra.mxu0 0
    %1475 = vmatprep.subr.bf16.mxu0 0
    %1476 = vmatpush2.bf16.msra.mxu0 0
    %1477 = vmatprep.subr.bf16.mxu0 0
    %1478 = vmatpush2.bf16.msra.mxu0 0
    %1479 = vmatprep.subr.bf16.mxu0 0
    %1480 = vmatpush2.bf16.msra.mxu0 0
    %1481 = vmatprep.subr.bf16.mxu0 0
    %1482 = vmatpush2.bf16.msra.mxu0 0
    %1483 = vmatprep.subr.bf16.mxu0 0
    %1484 = vmatpush2.bf16.msra.mxu0 0
    %1485 = vmatprep.subr.bf16.mxu0 0
    %1486 = vmatpush2.bf16.msra.mxu0 0
    %1487 = vmatprep.subr.bf16.mxu0 0
    %1488 = vmatpush2.bf16.msra.mxu0 0
    %1489 = vmatprep.mubr.bf16.mxu0 0
    %1490 = vmatmul.mubr.bf16.gmra.mxu0 %v1455
    %v1491 = vpop.f32.mrf.mxu0
    %v1492 = vadd.f32 0.0, %v1491
    %v1493 = vpop.f32.mrf.mxu0
    %v1494 = vpop.f32.mrf.mxu0
    %v1495 = vadd.f32 0.0, %v1494
    %v1496 = vpop.f32.mrf.mxu0
    %1497 = vdwg.mxu0
    %v1498 = vpack.c.bf16 %v1495, %v1492
    %v1500 = vunpack.c.l.b16 %v1498
    %v1501 = vunpack.c.h.b16 %v1498
    %v1502 = vpack.c.b16 %v1500, %v1500
    %v1503 = vpack.c.b16 %v1501, %v1501
    %1506 = vst [vmem:[#allocation3] sm:$0xf] %v1502
    %1507 = vst [vmem:[#allocation3 + $0x4] sm:$0xf] %v1503
    %v1508 = vpack.c.bf16 %v1314, %v1310
    %v1509 = vpack.c.bf16 %v1316, %v1312
    %v1510 = vpack.c.bf16 %v1364, %v1361
    %1511 = vmatprep.subr.bf16.mxu0 0
    %1512 = vmatpush1.bf16.xpose.msra.mxu0 0
    %1513 = vmatprep.subr.bf16.mxu0 0
    %1514 = vmatpush1.bf16.xpose.msra.mxu0 0
    %1515 = vmatprep.subr.bf16.mxu0 0
    %1516 = vmatpush1.bf16.xpose.msra.mxu0 0
    %1517 = vmatprep.subr.bf16.mxu0 0
    %1518 = vmatpush1.bf16.xpose.msra.mxu0 0
    %1519 = vmatprep.subr.bf16.mxu0 0
    %1520 = vmatpush1.bf16.xpose.msra.mxu0 0
    %1521 = vmatprep.subr.bf16.mxu0 0
    %1522 = vmatpush1.bf16.xpose.msra.mxu0 0
    %1523 = vmatprep.subr.bf16.mxu0 0
    %1524 = vmatpush1.bf16.xpose.msra.mxu0 0
    %1525 = vmatprep.subr.bf16.mxu0 0
    %1526 = vmatpush1.bf16.xpose.msra.mxu0 %v1509
    %1527 = vmatprep.subr.bf16.mxu0 0
    %1528 = vmatpush2.bf16.xpose.msra.mxu0 0
    %1529 = vmatprep.subr.bf16.mxu0 0
    %1530 = vmatpush2.bf16.xpose.msra.mxu0 0
    %1531 = vmatprep.subr.bf16.mxu0 0
    %1532 = vmatpush2.bf16.xpose.msra.mxu0 0
    %1533 = vmatprep.subr.bf16.mxu0 0
    %1534 = vmatpush2.bf16.xpose.msra.mxu0 0
    %1535 = vmatprep.subr.bf16.mxu0 0
    %1536 = vmatpush2.bf16.xpose.msra.mxu0 0
    %1537 = vmatprep.subr.bf16.mxu0 0
    %1538 = vmatpush2.bf16.xpose.msra.mxu0 0
    %1539 = vmatprep.subr.bf16.mxu0 0
    %1540 = vmatpush2.bf16.xpose.msra.mxu0 0
    %1541 = vmatprep.subr.bf16.mxu0 0
    %1542 = vmatpush2.bf16.xpose.msra.mxu0 0
    %1543 = vmatprep.mubr.bf16.mxu0 0
    %1544 = vmatmul.mubr.bf16.gmra.mxu0 %v1508
    %v1545 = vpop.f32.mrf.mxu0
    %v1546 = vadd.f32 0.0, %v1545
    %v1547 = vpop.f32.mrf.mxu0
    %v1548 = vpop.f32.mrf.mxu0
    %v1549 = vadd.f32 0.0, %v1548
    %v1550 = vpop.f32.mrf.mxu0
    %1551 = vdwg.mxu0
    %s1552 = scalar_lea.vmem %s3, 1
    %v1553 = vld [vmem:[%s1552] sm:$0x1]
    %vm1554 = vcmp.gt.s32.totalorder %v1553, 0
    %v1555 = vsel %vm1554, 1, 0
    %v1556 = vlaneseq
    %v1557 = vshrl.u32 %v1556, 7
    %v1558 = vsub.s32 0, %v1557
    %v1559 = vrot.slane %v1555, %v1558
    %vm1560 = vcmp.eq.s32.totalorder %v1559, 1
    %vm1561 = vmand %vm1372, %vm1560
    %vm1562 = vmand %vm1373, %vm1560
    %v1563 = vsel %vm1561, %v1546, -1e+30
    %v1564 = vsel %vm1562, %v1549, -1e+30
    %v1565 = vsel %vm1430, %v1563, -inf
    %1566 = vmax.xlane.f32.xlu0 %v1565
    %v1567 = vpop.xlane.xlu0 %1566
    %v1568 = vsel %vm1430, %v1564, -inf
    %1569 = vmax.xlane.f32.xlu0 %v1568
    %v1570 = vpop.xlane.xlu0 %1569
    %v1571 = vsub.f32 %v1563, %v1567
    %v1572 = vsub.f32 %v1564, %v1570
    %v1573 = vmul.f32 %v1571, 1.442695
    %v1574 = vpow.pop %v1573
    %v1575 = vmul.f32 %v1572, 1.442695
    %v1576 = vpow.pop %v1575
    %v1577 = vsel %vm1430, %v1574, 0.0
    %1578 = vadd.xlane.f32.xlu0 %v1577
    %v1579 = vpop.xlane.xlu0 %1578
    %v1580 = vsel %vm1430, %v1576, 0.0
    %1581 = vadd.xlane.f32.xlu0 %v1580
    %v1582 = vpop.xlane.xlu0 %1581
    %v1583 = vrcp.pop %v1579
    %v1584 = vrcp.pop %v1582
    %v1585 = vmul.f32 %v1574, %v1583
    %v1586 = vmul.f32 %v1576, %v1584
    %v1587 = vpack.c.bf16 %v1586, %v1585
    %v1589 = vsel %vm1430, %v1587, 0
    %1591 = vmatprep.subr.bf16.mxu0 0
    %1592 = vmatpush1.bf16.msra.mxu0 0
    %1593 = vmatprep.subr.bf16.mxu0 0
    %1594 = vmatpush1.bf16.msra.mxu0 0
    %1595 = vmatprep.subr.bf16.mxu0 0
    %1596 = vmatpush1.bf16.msra.mxu0 0
    %1597 = vmatprep.subr.bf16.mxu0 0
    %1598 = vmatpush1.bf16.msra.mxu0 0
    %1599 = vmatprep.subr.bf16.mxu0 0
    %1600 = vmatpush1.bf16.msra.mxu0 0
    %1601 = vmatprep.subr.bf16.mxu0 0
    %1602 = vmatpush1.bf16.msra.mxu0 0
    %1603 = vmatprep.subr.bf16.mxu0 0
    %1604 = vmatpush1.bf16.msra.mxu0 0
    %1605 = vmatprep.subr.bf16.mxu0 0
    %1606 = vmatpush1.bf16.msra.mxu0 %v1510
    %1607 = vmatprep.subr.bf16.mxu0 0
    %1608 = vmatpush2.bf16.msra.mxu0 0
    %1609 = vmatprep.subr.bf16.mxu0 0
    %1610 = vmatpush2.bf16.msra.mxu0 0
    %1611 = vmatprep.subr.bf16.mxu0 0
    %1612 = vmatpush2.bf16.msra.mxu0 0
    %1613 = vmatprep.subr.bf16.mxu0 0
    %1614 = vmatpush2.bf16.msra.mxu0 0
    %1615 = vmatprep.subr.bf16.mxu0 0
    %1616 = vmatpush2.bf16.msra.mxu0 0
    %1617 = vmatprep.subr.bf16.mxu0 0
    %1618 = vmatpush2.bf16.msra.mxu0 0
    %1619 = vmatprep.subr.bf16.mxu0 0
    %1620 = vmatpush2.bf16.msra.mxu0 0
    %1621 = vmatprep.subr.bf16.mxu0 0
    %1622 = vmatpush2.bf16.msra.mxu0 0
    %1623 = vmatprep.mubr.bf16.mxu0 0
    %1624 = vmatmul.mubr.bf16.gmra.mxu0 %v1589
    %v1625 = vpop.f32.mrf.mxu0
    %v1626 = vadd.f32 0.0, %v1625
    %v1627 = vpop.f32.mrf.mxu0
    %v1628 = vpop.f32.mrf.mxu0
    %v1629 = vadd.f32 0.0, %v1628
    %v1630 = vpop.f32.mrf.mxu0
    %1631 = vdwg.mxu0
    %v1632 = vpack.c.bf16 %v1629, %v1626
    %v1634 = vunpack.c.l.b16 %v1632
    %v1635 = vunpack.c.h.b16 %v1632
    %v1636 = vpack.c.b16 %v1634, %v1634
    %v1637 = vpack.c.b16 %v1635, %v1635
    %1640 = vst [vmem:[#allocation3 + $0x8] sm:$0xf] %v1636
    %1641 = vst [vmem:[#allocation3 + $0xc] sm:$0xf] %v1637
    %v1642 = vld [vmem:[#allocation2] sm:$0xff]
    %v1643 = vld [vmem:[#allocation2 + $0x8] sm:$0xff]
    %v1644 = vld [vmem:[#allocation2 + $0x10] sm:$0xff]
    %v1645 = vld [vmem:[#allocation2 + $0x18] sm:$0xff]
    %v1646 = vld [vmem:[#allocation3] sm:$0xf]
    %v1647 = vld [vmem:[#allocation3 + $0x4] sm:$0xf]
    %v1648 = vld [vmem:[#allocation3 + $0x8] sm:$0xf]
    %v1649 = vld [vmem:[#allocation3 + $0xc] sm:$0xf]
    %v1650 = vld [vmem:[%s10] sm:$0xf]
    %v1651 = vld [vmem:[%s10 + $0x4] sm:$0xf]
    %v1652 = vld [vmem:[%s10 + $0x8] sm:$0xf]
    %v1653 = vld [vmem:[%s10 + $0xc] sm:$0xf]
    %v1654 = vld [vmem:[%s10 + $0x10] sm:$0xf]
    %v1655 = vld [vmem:[%s10 + $0x14] sm:$0xf]
    %v1656 = vld [vmem:[%s10 + $0x18] sm:$0xf]
    %v1657 = vld [vmem:[%s10 + $0x1c] sm:$0xf]
    %v1658 = vld [vmem:[%s10 + $0x20] sm:$0xf]
    %v1659 = vld [vmem:[%s10 + $0x24] sm:$0xf]
    %v1660 = vld [vmem:[%s10 + $0x28] sm:$0xf]
    %v1661 = vld [vmem:[%s10 + $0x2c] sm:$0xf]
    %v1662 = vld [vmem:[%s10 + $0x30] sm:$0xf]
    %v1663 = vld [vmem:[%s10 + $0x34] sm:$0xf]
    %v1664 = vld [vmem:[%s10 + $0x38] sm:$0xf]
    %v1665 = vld [vmem:[%s10 + $0x3c] sm:$0xf]
    %v1670 = vunpack.c.l.b16 %v1646
    %v1671 = vunpack.c.l.b16 %v1647
    %v1672 = vunpack.c.l.b16 %v1648
    %v1673 = vunpack.c.l.b16 %v1649
    %v1674 = vpack.c.b16 %v1671, %v1670
    %v1675 = vpack.c.b16 %v1673, %v1672
    %v1694 = vunpack.c.l.b16 %v1650
    %v1695 = vunpack.c.l.b16 %v1651
    %v1696 = vunpack.c.l.b16 %v1652
    %v1697 = vunpack.c.l.b16 %v1653
    %v1698 = vunpack.c.l.b16 %v1654
    %v1699 = vunpack.c.l.b16 %v1655
    %v1700 = vunpack.c.l.b16 %v1656
    %v1701 = vunpack.c.l.b16 %v1657
    %v1702 = vunpack.c.l.b16 %v1658
    %v1703 = vunpack.c.l.b16 %v1659
    %v1704 = vunpack.c.l.b16 %v1660
    %v1705 = vunpack.c.l.b16 %v1661
    %v1706 = vunpack.c.l.b16 %v1662
    %v1707 = vunpack.c.l.b16 %v1663
    %v1708 = vunpack.c.l.b16 %v1664
    %v1709 = vunpack.c.l.b16 %v1665
    %v1710 = vpack.c.b16 %v1695, %v1694
    %v1711 = vpack.c.b16 %v1697, %v1696
    %v1712 = vpack.c.b16 %v1699, %v1698
    %v1713 = vpack.c.b16 %v1701, %v1700
    %v1714 = vpack.c.b16 %v1703, %v1702
    %v1715 = vpack.c.b16 %v1705, %v1704
    %v1716 = vpack.c.b16 %v1707, %v1706
    %v1717 = vpack.c.b16 %v1709, %v1708
    %1726 = vmatprep.subr.bf16.mxu0 0
    %1727 = vmatpush1.bf16.msra.mxu0 %v1717
    %1728 = vmatprep.subr.bf16.mxu0 0
    %1729 = vmatpush1.bf16.msra.mxu0 %v1716
    %1730 = vmatprep.subr.bf16.mxu0 0
    %1731 = vmatpush1.bf16.msra.mxu0 %v1715
    %1732 = vmatprep.subr.bf16.mxu0 0
    %1733 = vmatpush1.bf16.msra.mxu0 %v1714
    %1734 = vmatprep.subr.bf16.mxu0 0
    %1735 = vmatpush1.bf16.msra.mxu0 %v1713
    %1736 = vmatprep.subr.bf16.mxu0 0
    %1737 = vmatpush1.bf16.msra.mxu0 %v1712
    %1738 = vmatprep.subr.bf16.mxu0 0
    %1739 = vmatpush1.bf16.msra.mxu0 %v1711
    %1740 = vmatprep.subr.bf16.mxu0 0
    %1741 = vmatpush1.bf16.msra.mxu0 %v1710
    %1742 = vmatprep.subr.bf16.mxu0 0
    %1743 = vmatpush2.bf16.msra.mxu0 0
    %1744 = vmatprep.subr.bf16.mxu0 0
    %1745 = vmatpush2.bf16.msra.mxu0 0
    %1746 = vmatprep.subr.bf16.mxu0 0
    %1747 = vmatpush2.bf16.msra.mxu0 0
    %1748 = vmatprep.subr.bf16.mxu0 0
    %1749 = vmatpush2.bf16.msra.mxu0 0
    %1750 = vmatprep.subr.bf16.mxu0 0
    %1751 = vmatpush2.bf16.msra.mxu0 0
    %1752 = vmatprep.subr.bf16.mxu0 0
    %1753 = vmatpush2.bf16.msra.mxu0 0
    %1754 = vmatprep.subr.bf16.mxu0 0
    %1755 = vmatpush2.bf16.msra.mxu0 0
    %1756 = vmatprep.subr.bf16.mxu0 0
    %1757 = vmatpush2.bf16.msra.mxu0 0
    %1758 = vmatprep.mubr.bf16.mxu0 0
    %1759 = vmatmul.mubr.bf16.gmra.mxu0 %v1674
    %v1760 = vpop.f32.mrf.mxu0
    %v1761 = vadd.f32 0.0, %v1760
    %v1762 = vpop.f32.mrf.mxu0
    %v1763 = vpop.f32.mrf.mxu0
    %v1764 = vadd.f32 0.0, %v1763
    %v1765 = vpop.f32.mrf.mxu0
    %1766 = vmatprep.mubr.bf16.mxu0 0
    %1767 = vmatmul.mubr.bf16.gmra.mxu0 %v1675
    %v1768 = vpop.f32.mrf.mxu0
    %v1769 = vadd.f32 0.0, %v1768
    %v1770 = vpop.f32.mrf.mxu0
    %v1771 = vpop.f32.mrf.mxu0
    %v1772 = vadd.f32 0.0, %v1771
    %v1773 = vpop.f32.mrf.mxu0
    %1774 = vdwg.mxu0
    %v1775 = vadd.f32 %v1642, %v1761
    %v1776 = vadd.f32 %v1643, %v1764
    %v1777 = vadd.f32 %v1644, %v1769
    %v1778 = vadd.f32 %v1645, %v1772
    %v1779 = vpack.c.bf16 %v1776, %v1775
    %v1780 = vpack.c.bf16 %v1778, %v1777
    %v1781 = vld [vmem:[%s11] sm:$0xf]
    %v1782 = vld [vmem:[%s11 + $0x4] sm:$0xf]
    %v1783 = vld [vmem:[%s11 + $0x8] sm:$0xf]
    %v1784 = vld [vmem:[%s11 + $0xc] sm:$0xf]
    %v1785 = vld [vmem:[%s11 + $0x10] sm:$0xf]
    %v1786 = vld [vmem:[%s11 + $0x14] sm:$0xf]
    %v1787 = vld [vmem:[%s11 + $0x18] sm:$0xf]
    %v1788 = vld [vmem:[%s11 + $0x1c] sm:$0xf]
    %v1789 = vld [vmem:[%s11 + $0x20] sm:$0xf]
    %v1790 = vld [vmem:[%s11 + $0x24] sm:$0xf]
    %v1791 = vld [vmem:[%s11 + $0x28] sm:$0xf]
    %v1792 = vld [vmem:[%s11 + $0x2c] sm:$0xf]
    %v1793 = vld [vmem:[%s11 + $0x30] sm:$0xf]
    %v1794 = vld [vmem:[%s11 + $0x34] sm:$0xf]
    %v1795 = vld [vmem:[%s11 + $0x38] sm:$0xf]
    %v1796 = vld [vmem:[%s11 + $0x3c] sm:$0xf]
    %v1797 = vld [vmem:[%s12] sm:$0x1]
    %v1799 = vlaneseq
    %v1800 = vshrl.u32 %v1799, 7
    %v1801 = vsub.s32 0, %v1800
    %v1802 = vrot.slane %v1797, %v1801
    %v1820 = vunpack.c.l.b16 %v1781
    %v1821 = vunpack.c.l.b16 %v1782
    %v1822 = vunpack.c.l.b16 %v1783
    %v1823 = vunpack.c.l.b16 %v1784
    %v1824 = vunpack.c.l.b16 %v1785
    %v1825 = vunpack.c.l.b16 %v1786
    %v1826 = vunpack.c.l.b16 %v1787
    %v1827 = vunpack.c.l.b16 %v1788
    %v1828 = vunpack.c.l.b16 %v1789
    %v1829 = vunpack.c.l.b16 %v1790
    %v1830 = vunpack.c.l.b16 %v1791
    %v1831 = vunpack.c.l.b16 %v1792
    %v1832 = vunpack.c.l.b16 %v1793
    %v1833 = vunpack.c.l.b16 %v1794
    %v1834 = vunpack.c.l.b16 %v1795
    %v1835 = vunpack.c.l.b16 %v1796
    %v1836 = vpack.c.b16 %v1821, %v1820
    %v1837 = vpack.c.b16 %v1823, %v1822
    %v1838 = vpack.c.b16 %v1825, %v1824
    %v1839 = vpack.c.b16 %v1827, %v1826
    %v1840 = vpack.c.b16 %v1829, %v1828
    %v1841 = vpack.c.b16 %v1831, %v1830
    %v1842 = vpack.c.b16 %v1833, %v1832
    %v1843 = vpack.c.b16 %v1835, %v1834
    %1852 = vmatprep.subr.bf16.mxu0 0
    %1853 = vmatpush1.bf16.msra.mxu0 %v1843
    %1854 = vmatprep.subr.bf16.mxu0 0
    %1855 = vmatpush1.bf16.msra.mxu0 %v1842
    %1856 = vmatprep.subr.bf16.mxu0 0
    %1857 = vmatpush1.bf16.msra.mxu0 %v1841
    %1858 = vmatprep.subr.bf16.mxu0 0
    %1859 = vmatpush1.bf16.msra.mxu0 %v1840
    %1860 = vmatprep.subr.bf16.mxu0 0
    %1861 = vmatpush1.bf16.msra.mxu0 %v1839
    %1862 = vmatprep.subr.bf16.mxu0 0
    %1863 = vmatpush1.bf16.msra.mxu0 %v1838
    %1864 = vmatprep.subr.bf16.mxu0 0
    %1865 = vmatpush1.bf16.msra.mxu0 %v1837
    %1866 = vmatprep.subr.bf16.mxu0 0
    %1867 = vmatpush1.bf16.msra.mxu0 %v1836
    %1868 = vmatprep.subr.bf16.mxu0 0
    %1869 = vmatpush2.bf16.msra.mxu0 0
    %1870 = vmatprep.subr.bf16.mxu0 0
    %1871 = vmatpush2.bf16.msra.mxu0 0
    %1872 = vmatprep.subr.bf16.mxu0 0
    %1873 = vmatpush2.bf16.msra.mxu0 0
    %1874 = vmatprep.subr.bf16.mxu0 0
    %1875 = vmatpush2.bf16.msra.mxu0 0
    %1876 = vmatprep.subr.bf16.mxu0 0
    %1877 = vmatpush2.bf16.msra.mxu0 0
    %1878 = vmatprep.subr.bf16.mxu0 0
    %1879 = vmatpush2.bf16.msra.mxu0 0
    %1880 = vmatprep.subr.bf16.mxu0 0
    %1881 = vmatpush2.bf16.msra.mxu0 0
    %1882 = vmatprep.subr.bf16.mxu0 0
    %1883 = vmatpush2.bf16.msra.mxu0 0
    %1884 = vmatprep.mubr.bf16.mxu0 0
    %1885 = vmatmul.mubr.bf16.gmra.mxu0 %v1779
    %v1886 = vpop.f32.mrf.mxu0
    %v1887 = vadd.f32 %v1802, %v1886
    %v1888 = vpop.f32.mrf.mxu0
    %v1889 = vpop.f32.mrf.mxu0
    %v1890 = vadd.f32 %v1802, %v1889
    %v1891 = vpop.f32.mrf.mxu0
    %1892 = vmatprep.mubr.bf16.mxu0 0
    %1893 = vmatmul.mubr.bf16.gmra.mxu0 %v1780
    %v1894 = vpop.f32.mrf.mxu0
    %v1895 = vadd.f32 %v1802, %v1894
    %v1896 = vpop.f32.mrf.mxu0
    %v1897 = vpop.f32.mrf.mxu0
    %v1898 = vadd.f32 %v1802, %v1897
    %v1899 = vpop.f32.mrf.mxu0
    %1900 = vdwg.mxu0
    %1901 = vst [vmem:[#allocation4] sm:$0xff] %v1887
    %1902 = vst [vmem:[#allocation4 + $0x8] sm:$0xff] %v1890
    %1903 = vst [vmem:[#allocation4 + $0x10] sm:$0xff] %v1895
    %1904 = vst [vmem:[#allocation4 + $0x18] sm:$0xff] %v1898
    %v1905 = vld [vmem:[%s4] sm:$0xff]
    %v1906 = vld [vmem:[%s4 + $0x8] sm:$0xff]
    %v1907 = vld [vmem:[%s4 + $0x10] sm:$0xff]
    %v1908 = vld [vmem:[%s4 + $0x18] sm:$0xff]
    %vm1909 = vcmp.ne.s32.totalorder %v1905, 4294967196
    %vm1910 = vcmp.ne.s32.totalorder %v1906, 4294967196
    %vm1911 = vcmp.ne.s32.totalorder %v1907, 4294967196
    %vm1912 = vcmp.ne.s32.totalorder %v1908, 4294967196
    %v1913 = vsel %vm1909, %v1905, 0
    %v1914 = vsel %vm1910, %v1906, 0
    %v1915 = vsel %vm1911, %v1907, 0
    %v1916 = vsel %vm1912, %v1908, 0
    %1917 = vset.pattern.permute.xlu0 0
    %1918 = vperm.xlu0 %1917, %v1913
    %v1919 = vpop.permute.xlu0 %1918
    %1920 = vset.pattern.permute.xlu0 0
    %1921 = vperm.xlu0 %1920, %v1914
    %v1922 = vpop.permute.xlu0 %1921
    %1923 = vset.pattern.permute.xlu0 0
    %1924 = vperm.xlu0 %1923, %v1915
    %v1925 = vpop.permute.xlu0 %1924
    %1926 = vset.pattern.permute.xlu0 0
    %1927 = vperm.xlu0 %1926, %v1916
    %v1928 = vpop.permute.xlu0 %1927
    %vm1929 = vcmp.eq.s32.totalorder %v1371, %v1919
    %vm1930 = vcmp.eq.s32.totalorder %v1371, %v1922
    %vm1931 = vcmp.eq.s32.totalorder %v1371, %v1925
    %vm1932 = vcmp.eq.s32.totalorder %v1371, %v1928
    %v1933 = vsel %vm1929, 1, 0
    %v1934 = vsel %vm1930, 1, 0
    %v1935 = vsel %vm1931, 1, 0
    %v1936 = vsel %vm1932, 1, 0
    %v1937 = vcvt.s32.f32 %v1933
    %v1938 = vcvt.s32.f32 %v1934
    %v1939 = vcvt.s32.f32 %v1935
    %v1940 = vcvt.s32.f32 %v1936
    %1941 = vmax.xlane.f32.xlu0 %v1887
    %v1942 = vpop.xlane.xlu0 %1941
    %1943 = vmax.xlane.f32.xlu0 %v1890
    %v1944 = vpop.xlane.xlu0 %1943
    %1945 = vmax.xlane.f32.xlu0 %v1895
    %v1946 = vpop.xlane.xlu0 %1945
    %1947 = vmax.xlane.f32.xlu0 %v1898
    %v1948 = vpop.xlane.xlu0 %1947
    %v1949 = vsub.f32 %v1887, %v1942
    %v1950 = vsub.f32 %v1890, %v1944
    %v1951 = vsub.f32 %v1895, %v1946
    %v1952 = vsub.f32 %v1898, %v1948
    %v1953 = vmul.f32 %v1949, 1.442695
    %v1954 = vpow.pop %v1953
    %v1955 = vmul.f32 %v1950, 1.442695
    %v1956 = vpow.pop %v1955
    %v1957 = vmul.f32 %v1951, 1.442695
    %v1958 = vpow.pop %v1957
    %v1959 = vmul.f32 %v1952, 1.442695
    %v1960 = vpow.pop %v1959
    %1961 = vadd.xlane.f32.xlu0 %v1954
    %v1962 = vpop.xlane.xlu0 %1961
    %1963 = vadd.xlane.f32.xlu0 %v1956
    %v1964 = vpop.xlane.xlu0 %1963
    %1965 = vadd.xlane.f32.xlu0 %v1958
    %v1966 = vpop.xlane.xlu0 %1965
    %1967 = vadd.xlane.f32.xlu0 %v1960
    %v1968 = vpop.xlane.xlu0 %1967
    %v1969 = vlog2.pop %v1962
    %v1970 = vmul.f32 %v1969, 0.6931472
    %v1971 = vlog2.pop %v1964
    %v1972 = vmul.f32 %v1971, 0.6931472
    %v1973 = vlog2.pop %v1966
    %v1974 = vmul.f32 %v1973, 0.6931472
    %v1975 = vlog2.pop %v1968
    %v1976 = vmul.f32 %v1975, 0.6931472
    %v1977 = vadd.f32 %v1942, %v1970
    %v1978 = vadd.f32 %v1944, %v1972
    %v1979 = vadd.f32 %v1946, %v1974
    %v1980 = vadd.f32 %v1948, %v1976
    %v1981 = vmul.f32 %v1887, %v1937
    %v1982 = vmul.f32 %v1890, %v1938
    %v1983 = vmul.f32 %v1895, %v1939
    %v1984 = vmul.f32 %v1898, %v1940
    %1985 = vadd.xlane.f32.xlu0 %v1981
    %v1986 = vpop.xlane.xlu0 %1985
    %1987 = vadd.xlane.f32.xlu0 %v1982
    %v1988 = vpop.xlane.xlu0 %1987
    %1989 = vadd.xlane.f32.xlu0 %v1983
    %v1990 = vpop.xlane.xlu0 %1989
    %1991 = vadd.xlane.f32.xlu0 %v1984
    %v1992 = vpop.xlane.xlu0 %1991
    %v1993 = vsub.f32 %v1977, %v1986
    %v1994 = vsub.f32 %v1978, %v1988
    %v1995 = vsub.f32 %v1979, %v1990
    %v1996 = vsub.f32 %v1980, %v1992
    %v1997 = vsel %vm1909, 1, 0
    %v1998 = vsel %vm1910, 1, 0
    %v1999 = vsel %vm1911, 1, 0
    %v2000 = vsel %vm1912, 1, 0
    %v2001 = vcvt.s32.f32 %v1997
    %v2002 = vcvt.s32.f32 %v1998
    %v2003 = vcvt.s32.f32 %v1999
    %v2004 = vcvt.s32.f32 %v2000
    %v2005 = vmul.f32 %v1993, %v2001
    %v2006 = vmul.f32 %v1994, %v2002
    %v2007 = vmul.f32 %v1995, %v2003
    %v2008 = vmul.f32 %v1996, %v2004
    %vm2009 = vcmask 7168
    %v2010 = vsel %vm2009, %v2005, 0.0
    %v2011 = vsel %vm2009, %v2006, 0.0
    %v2012 = vadd.f32 %v2010, %v2011
    %v2013 = vsel %vm2009, %v2007, 0.0
    %v2014 = vadd.f32 %v2012, %v2013
    %v2015 = vsel %vm2009, %v2008, 0.0
    %v2016 = vadd.f32 %v2014, %v2015
    %v2017 = vrot.slane %v2016, 4
    %v2018 = vadd.f32 %v2016, %v2017
    %v2019 = vrot.slane %v2018, 2
    %v2020 = vadd.f32 %v2018, %v2019
    %v2021 = vrot.slane %v2020, 1
    %v2022 = vadd.f32 %v2020, %v2021
    %vm2023 = vcmask 0
    %2024 = vst.msk [vmem:[#allocation6] sm:$0x1] %vm2023, %v2022
    // Predicated region
    $region54: #{_lambda_.1} parent=1 // pred_check
      _
    $region55: #{_lambda_.1} parent=1 // pred_check_branch
      %2026 = sbr.rel (0) target = $region57
    $region56: #{_lambda_.1} parent=1 // pred_region
      %s2028 = ssub.s32 512, 512
      %2029 = vsyncadd [#allocation5], %s2028
      %s2030 = sshll.u32 [#allocation4], 4
      %s2031 = int_to_ptr.vmem [resolvable:$true] %s2030
      %2036 = dma.vmem_to_hbm [thread:$0]  %s2031, 512, %s13, [#allocation5], 128, 128, 8
    $region57: #{_lambda_.1} parent=1 // pred_fallthru
      _
    // Predicated region
    $region58: #{_lambda_.1} parent=1 // pred_check
      _
    $region59: #{_lambda_.1} parent=1 // pred_check_branch
      %2038 = sbr.rel (0) target = $region61
    $region60: #{_lambda_.1} parent=1 // pred_region
      %s2040 = ssub.s32 16, 16
      %2041 = vsyncadd [#allocation7], %s2040
      %s2043 = sshll.u32 [#allocation6], 4
      %s2044 = int_to_ptr.vmem [resolvable:$true] %s2043
      %2046 = dma.vmem_to_hbm [thread:$0]  %s2044, 16, %s14, [#allocation7]
    $region61: #{_lambda_.1} parent=1 // pred_fallthru
      _
    // Predicated region
    $region62: #{_lambda_.1} parent=1 // pred_check
      _
    $region63: #{_lambda_.1} parent=1 // pred_check_branch
      %2048 = sbr.rel (0) target = $region65
    $region64: #{_lambda_.1} parent=1 // pred_region
      %2049 = dma.done [#allocation5], 512
    $region65: #{_lambda_.1} parent=1 // pred_fallthru
      _
    // Predicated region
    $region66: #{_lambda_.1} parent=1 // pred_check
      _
    $region67: #{_lambda_.1} parent=1 // pred_check_branch
      %2051 = sbr.rel (0) target = $region69
    $region68: #{_lambda_.1} parent=1 // pred_region
      %2052 = dma.done [#allocation7], 16
    $region69: #{_lambda_.1} parent=1 // pred_fallthru
      _
    %2053 = vsyncpa [#allocation5], 1
    %2054 = vsyncpa [#allocation7], 1

</llo_original>
